<compile_context>
chip_gen: v7x
topology: tpu7x:2x2x1
jax: 0.10.0
libtpu: 0.0.40
codegen_flags: <defaults>
</compile_context>

<pallas_src>
import math
import functools

import jax
import jax.numpy as jnp
from jax.experimental import pallas as pl
from jax.experimental.pallas import tpu as pltpu

NEG_INF = -1e9
LN_EPS = 1e-6


# ----------------------------------------------------------------------------
# Tiling / compiler-parameter helpers
# ----------------------------------------------------------------------------

def _row_tile(m):
    """Largest preferred row tile that divides m (multiple of 8), else the full extent."""
    for t in (256, 128, 64, 32, 16, 8):
        if m % t == 0:
            return t
    return m


def _vocab_tile(v):
    """Vocab-axis tile (multiple of 128) dividing v, else the full extent."""
    for t in (1024, 512, 256, 128):
        if v % t == 0:
            return t
    return v


@functools.lru_cache()
def _vmem_capacity():
    try:
        return int(pltpu.get_tpu_info().vmem_capacity_bytes)
    except Exception:
        return 128 * 1024 * 1024


def _compiler_params(semantics, block_shapes):
    """CompilerParams with an explicit VMEM budget derived from the actual blocks
    (conservatively 4 bytes/elem, x4 for double-buffering + in-kernel temporaries)."""
    nbytes = sum(4 * math.prod(s) for s in block_shapes)
    limit = max(4 * nbytes + (8 << 20), 32 << 20)
    limit = min(limit, 96 << 20, _vmem_capacity())
    return pltpu.CompilerParams(dimension_semantics=semantics,
                                vmem_limit_bytes=int(limit))


_BUFFERED_ONE = None


def _probe_buffered_one():
    """Check once whether pipeline_mode=pl.Buffered(1) (single-buffered resident
    weight blocks) is supported; fall back to default double-buffering otherwise."""
    def k(x_ref, o_ref):
        o_ref[...] = x_ref[...] * 2.0
    try:
        fn = pl.pallas_call(
            k,
            out_shape=jax.ShapeDtypeStruct((16, 128), jnp.float32),
            grid=(2,),
            in_specs=[pl.BlockSpec((8, 128), lambda i: (0, 0),
                                   pipeline_mode=pl.Buffered(1))],
            out_specs=pl.BlockSpec((8, 128), lambda i: (i, 0)),
        )
        x = jnp.arange(8 * 128, dtype=jnp.float32).reshape(8, 128)
        out = jax.block_until_ready(fn(x))
        return bool(jnp.allclose(out[:8], 2.0 * x) and jnp.allclose(out[8:], 2.0 * x))
    except Exception:
        return False


def _const_spec(shape):
    """BlockSpec for a block whose index never changes (weights / LN params / biases)."""
    global _BUFFERED_ONE
    if _BUFFERED_ONE is None:
        _BUFFERED_ONE = _probe_buffered_one()
    index_map = lambda *_: (0,) * len(shape)
    if _BUFFERED_ONE:
        return pl.BlockSpec(shape, index_map, pipeline_mode=pl.Buffered(1))
    return pl.BlockSpec(shape, index_map)


# ----------------------------------------------------------------------------
# In-kernel math helpers
# ----------------------------------------------------------------------------

def _ln(x, g, b, eps):
    """Row-wise LayerNorm in f32; g/b are (1, D)."""
    mean = jnp.mean(x, axis=-1, keepdims=True)
    var = jnp.mean(jnp.square(x - mean), axis=-1, keepdims=True)
    return (x - mean) * jax.lax.rsqrt(var + eps) * g + b


def _mm(a, w):
    """MXU matmul: bf16 operands (weights already bf16 in HBM), f32 accumulation."""
    return jnp.dot(a.astype(jnp.bfloat16), w.astype(jnp.bfloat16),
                   preferred_element_type=jnp.float32)


def _split_heads(x, num_heads, d_k, base=0):
    """(S, >= base + H*d_k) -> (H, S, d_k) via static lane slices + leading-axis stack."""
    return jnp.stack([x[:, base + h * d_k: base + (h + 1) * d_k]
                      for h in range(num_heads)], axis=0)


def _merge_heads(ctx):
    """(H, S, d_k) -> (S, H*d_k)."""
    return jnp.concatenate([ctx[h] for h in range(ctx.shape[0])], axis=-1)


def _attention(qh, kh, vh, bias2d, d_k):
    """Batched-over-heads SDPA.  qh: (H,Sq,dk), kh/vh: (H,Sk,dk), bias2d: (1|Sq,Sk)."""
    qh = (qh * (1.0 / math.sqrt(d_k))).astype(jnp.bfloat16)   # scale folded into Q
    kh = kh.astype(jnp.bfloat16)
    vh = vh.astype(jnp.bfloat16)
    s = jnp.einsum('hqd,hkd->hqk', qh, kh, preferred_element_type=jnp.float32)
    s = s + bias2d[None, :, :]                                 # additive 0 / -1e9 mask
    s = s - jnp.max(s, axis=-1, keepdims=True)
    p = jnp.exp(s)
    p = p / jnp.sum(p, axis=-1, keepdims=True)                 # exact normalization
    return jnp.einsum('hqk,hkd->hqd', p.astype(jnp.bfloat16), vh,
                      preferred_element_type=jnp.float32)


# ----------------------------------------------------------------------------
# Fused Pallas kernels
# ----------------------------------------------------------------------------

def _self_attn_kernel(x_ref, bias_ref, g_ref, b_ref, wqkv_ref, bqkv_ref,
                      w0_ref, b0_ref, o_ref, *, num_heads, d_k, eps):
    x = x_ref[0]                                               # (S, D) f32
    D = num_heads * d_k
    xn = _ln(x, g_ref[...], b_ref[...], eps)
    qkv = _mm(xn, wqkv_ref[...]) + bqkv_ref[...]               # fused QKV projection (S, 3D)
    qh = _split_heads(qkv, num_heads, d_k, 0)
    kh = _split_heads(qkv, num_heads, d_k, D)
    vh = _split_heads(qkv, num_heads, d_k, 2 * D)
    ctx = _merge_heads(_attention(qh, kh, vh, bias_ref[0], d_k))
    o_ref[0] = x + _mm(ctx, w0_ref[...]) + b0_ref[...]


def _cross_attn_kernel(x_ref, k_ref, v_ref, bias_ref, g_ref, b_ref,
                       wq_ref, bq_ref, w0_ref, b0_ref, o_ref, *, num_heads, d_k, eps):
    x = x_ref[0]                                               # (Sq, D) f32
    xn = _ln(x, g_ref[...], b_ref[...], eps)
    q = _mm(xn, wq_ref[...]) + bq_ref[...]
    qh = _split_heads(q, num_heads, d_k)
    kh = _split_heads(k_ref[0], num_heads, d_k)                # precomputed K/V (bf16)
    vh = _split_heads(v_ref[0], num_heads, d_k)
    ctx = _merge_heads(_attention(qh, kh, vh, bias_ref[0], d_k))
    o_ref[0] = x + _mm(ctx, w0_ref[...]) + b0_ref[...]


def _kv_project_kernel(x_ref, wkv_ref, bkv_ref, k_ref, v_ref):
    D = x_ref.shape[-1]
    kv = _mm(x_ref[...], wkv_ref[...]) + bkv_ref[...]          # fused K,V projection (tm, 2D)
    k_ref[...] = kv[:, :D].astype(jnp.bfloat16)
    v_ref[...] = kv[:, D:].astype(jnp.bfloat16)


def _ff_kernel(x_ref, g_ref, b_ref, w1_ref, b1_ref, w2_ref, b2_ref, o_ref, *, eps):
    x = x_ref[...]                                             # (tm, D)
    xn = _ln(x, g_ref[...], b_ref[...], eps)
    h = jnp.maximum(_mm(xn, w1_ref[...]) + b1_ref[...], 0.0)
    o_ref[...] = x + _mm(h, w2_ref[...]) + b2_ref[...]


def _ln_kernel(x_ref, g_ref, b_ref, o_ref, *, eps):
    o_ref[...] = _ln(x_ref[...], g_ref[...], b_ref[...], eps)


def _proj_lse_kernel(x_ref, w_ref, b_ref, logits_ref, lse_ref, m_sc, l_sc):
    """Vocab-tiled output projection with online log-sum-exp (grid = (rows, vocab))."""
    j = pl.program_id(1)

    @pl.when(j == 0)
    def _():
        m_sc[...] = jnp.full_like(m_sc, -jnp.inf)
        l_sc[...] = jnp.zeros_like(l_sc)

    logits = _mm(x_ref[...], w_ref[...]) + b_ref[...]          # (tm, tv) f32
    logits_ref[...] = logits
    m_prev = m_sc[...]
    m_new = jnp.maximum(m_prev, jnp.max(logits, axis=-1, keepdims=True))
    l_sc[...] = l_sc[...] * jnp.exp(m_prev - m_new) + \
        jnp.sum(jnp.exp(logits - m_new), axis=-1, keepdims=True)
    m_sc[...] = m_new

    @pl.when(j == pl.num_programs(1) - 1)
    def _():
        lse_ref[...] = m_sc[...] + jnp.log(l_sc[...])


def _sub_lse_kernel(logits_ref, lse_ref, o_ref):
    o_ref[...] = logits_ref[...] - lse_ref[...]


# ----------------------------------------------------------------------------
# pallas_call wrappers
# ----------------------------------------------------------------------------

def self_attn_sublayer(x, bias, ln_g, ln_b, ap, cfg):
    B, S, D = x.shape
    Sm, Sk = bias.shape[1], bias.shape[2]
    H = cfg['num_heads']
    kern = functools.partial(_self_attn_kernel, num_heads=H, d_k=cfg['d_k'], eps=LN_EPS)
    blocks = [(S, D), (Sm, Sk), (D, 3 * D), (D, D), (S, 3 * D), (H, S, Sk), (S, D)]
    return pl.pallas_call(
        kern,
        out_shape=jax.ShapeDtypeStruct((B, S, D), jnp.float32),
        grid=(B,),
        in_specs=[
            pl.BlockSpec((1, S, D), lambda i: (i, 0, 0)),
            pl.BlockSpec((1, Sm, Sk), lambda i: (i, 0, 0)),
            _const_spec((1, D)), _const_spec((1, D)),
            _const_spec((D, 3 * D)), _const_spec((1, 3 * D)),
            _const_spec((D, D)), _const_spec((1, D)),
        ],
        out_specs=pl.BlockSpec((1, S, D), lambda i: (i, 0, 0)),
        compiler_params=_compiler_params(("parallel",), blocks),
    )(x, bias, ln_g, ln_b, ap['wqkv'], ap['bqkv'], ap['w0'], ap['b0'])


def cross_attn_sublayer(x, k, v, bias, ln_g, ln_b, ap, cfg):
    B, Sq, D = x.shape
    Sk = k.shape[1]
    Sm, Sb = bias.shape[1], bias.shape[2]
    H = cfg['num_heads']
    kern = functools.partial(_cross_attn_kernel, num_heads=H, d_k=cfg['d_k'], eps=LN_EPS)
    blocks = [(Sq, D), (Sk, D), (Sk, D), (Sm, Sb), (D, D), (D, D), (H, Sq, Sk), (Sq, D)]
    return pl.pallas_call(
        kern,
        out_shape=jax.ShapeDtypeStruct((B, Sq, D), jnp.float32),
        grid=(B,),
        in_specs=[
            pl.BlockSpec((1, Sq, D), lambda i: (i, 0, 0)),
            pl.BlockSpec((1, Sk, D), lambda i: (i, 0, 0)),
            pl.BlockSpec((1, Sk, D), lambda i: (i, 0, 0)),
            pl.BlockSpec((1, Sm, Sb), lambda i: (i, 0, 0)),
            _const_spec((1, D)), _const_spec((1, D)),
            _const_spec((D, D)), _const_spec((1, D)),
            _const_spec((D, D)), _const_spec((1, D)),
        ],
        out_specs=pl.BlockSpec((1, Sq, D), lambda i: (i, 0, 0)),
        compiler_params=_compiler_params(("parallel",), blocks),
    )(x, k, v, bias, ln_g, ln_b, ap['wq'], ap['bq'], ap['w0'], ap['b0'])


def cross_kv_project(e_out, ap):
    """Project the (fixed) encoder output to cross-attention K/V (bf16), row-tiled."""
    B, Sk, D = e_out.shape
    M = B * Sk
    tm = _row_tile(M)
    blocks = [(tm, D), (D, 2 * D), (tm, 2 * D), (tm, D), (tm, D)]
    k2, v2 = pl.pallas_call(
        _kv_project_kernel,
        out_shape=(jax.ShapeDtypeStruct((M, D), jnp.bfloat16),
                   jax.ShapeDtypeStruct((M, D), jnp.bfloat16)),
        grid=(M // tm,),
        in_specs=[pl.BlockSpec((tm, D), lambda i: (i, 0)),
                  _const_spec((D, 2 * D)), _const_spec((1, 2 * D))],
        out_specs=(pl.BlockSpec((tm, D), lambda i: (i, 0)),
                   pl.BlockSpec((tm, D), lambda i: (i, 0))),
        compiler_params=_compiler_params(("parallel",), blocks),
    )(e_out.reshape(M, D), ap['wkv'], ap['bkv'])
    return k2.reshape(B, Sk, D), v2.reshape(B, Sk, D)


def ff_sublayer(x, ln_g, ln_b, fp, cfg):
    B, S, D = x.shape
    F = cfg['d_ff']
    M = B * S
    tm = _row_tile(M)
    kern = functools.partial(_ff_kernel, eps=LN_EPS)
    blocks = [(tm, D), (D, F), (F, D), (tm, F), (tm, D)]
    out = pl.pallas_call(
        kern,
        out_shape=jax.ShapeDtypeStruct((M, D), jnp.float32),
        grid=(M // tm,),
        in_specs=[pl.BlockSpec((tm, D), lambda i: (i, 0)),
                  _const_spec((1, D)), _const_spec((1, D)),
                  _const_spec((D, F)), _const_spec((1, F)),
                  _const_spec((F, D)), _const_spec((1, D))],
        out_specs=pl.BlockSpec((tm, D), lambda i: (i, 0)),
        compiler_params=_compiler_params(("parallel",), blocks),
    )(x.reshape(M, D), ln_g, ln_b, fp['w1'], fp['b1'], fp['w2'], fp['b2'])
    return out.reshape(B, S, D)


def layer_norm(x, g, b):
    B, S, D = x.shape
    M = B * S
    tm = _row_tile(M)
    kern = functools.partial(_ln_kernel, eps=LN_EPS)
    out = pl.pallas_call(
        kern,
        out_shape=jax.ShapeDtypeStruct((M, D), jnp.float32),
        grid=(M // tm,),
        in_specs=[pl.BlockSpec((tm, D), lambda i: (i, 0)),
                  _const_spec((1, D)), _const_spec((1, D))],
        out_specs=pl.BlockSpec((tm, D), lambda i: (i, 0)),
        compiler_params=_compiler_params(("parallel",), [(tm, D), (tm, D)]),
    )(x.reshape(M, D), g, b)
    return out.reshape(B, S, D)


def proj_log_softmax(x2d, w, b):
    """Output projection + LogSoftmax, tiled over rows AND the vocab axis (online LSE)."""
    M, D = x2d.shape
    V = w.shape[1]
    tm = _row_tile(M)
    tv = _vocab_tile(V)
    blocks = [(tm, D), (D, tv), (tm, tv)]
    logits, lse = pl.pallas_call(
        _proj_lse_kernel,
        out_shape=(jax.ShapeDtypeStruct((M, V), jnp.float32),
                   jax.ShapeDtypeStruct((M, 1), jnp.float32)),
        grid=(M // tm, V // tv),
        in_specs=[pl.BlockSpec((tm, D), lambda i, j: (i, 0)),
                  pl.BlockSpec((D, tv), lambda i, j: (0, j)),
                  pl.BlockSpec((1, tv), lambda i, j: (0, j))],
        out_specs=(pl.BlockSpec((tm, tv), lambda i, j: (i, j)),
                   pl.BlockSpec((tm, 1), lambda i, j: (i, 0))),
        scratch_shapes=[pltpu.VMEM((tm, 1), jnp.float32),
                        pltpu.VMEM((tm, 1), jnp.float32)],
        compiler_params=_compiler_params(("parallel", "arbitrary"), blocks),
    )(x2d, w, b)
    return pl.pallas_call(
        _sub_lse_kernel,
        out_shape=jax.ShapeDtypeStruct((M, V), jnp.float32),
        grid=(M // tm, V // tv),
        in_specs=[pl.BlockSpec((tm, tv), lambda i, j: (i, j)),
                  pl.BlockSpec((tm, 1), lambda i, j: (i, 0))],
        out_specs=pl.BlockSpec((tm, tv), lambda i, j: (i, j)),
        compiler_params=_compiler_params(("parallel", "parallel"), [(tm, tv), (tm, tv)]),
    )(logits, lse)


# ----------------------------------------------------------------------------
# Model glue (plain JAX: embedding lookup, positional encoding, layer loops)
# ----------------------------------------------------------------------------

def mask_to_bias(mask, batch, klen):
    """PyTorch masked_fill(mask == 0, -1e9) as a pre-baked additive bias."""
    if mask is None:
        return jnp.zeros((batch, 1, klen), jnp.float32)
    return jnp.where(mask == 0, NEG_INF, 0.0).astype(jnp.float32)


def encode(p, x, e_bias, cfg):
    for lp in p['layers']:
        x = self_attn_sublayer(x, e_bias, lp['ln1_g'], lp['ln1_b'], lp['attn'], cfg)
        x = ff_sublayer(x, lp['ln2_g'], lp['ln2_b'], lp['ff'], cfg)
    return layer_norm(x, p['ln_g'], p['ln_b'])


def precompute_cross_kv(p, e_output):
    """Cross-attention K/V per decoder layer, computed once from the fixed encoder output."""
    return [cross_kv_project(e_output, lp['cross_attn']) for lp in p['layers']]


def decode(p, x, cross_kvs, e_bias, d_bias, cfg):
    for lp, (k, v) in zip(p['layers'], cross_kvs):
        x = self_attn_sublayer(x, d_bias, lp['ln1_g'], lp['ln1_b'], lp['self_attn'], cfg)
        x = cross_attn_sublayer(x, k, v, e_bias, lp['ln2_g'], lp['ln2_b'], lp['cross_attn'], cfg)
        x = ff_sublayer(x, lp['ln3_g'], lp['ln3_b'], lp['ff'], cfg)
    return layer_norm(x, p['ln_g'], p['ln_b'])


def make_positional_encoding(max_len, d_model):
    pos = jnp.arange(max_len, dtype=jnp.float32)[:, None]
    i = jnp.arange(d_model)[None, :]
    angle = pos / jnp.power(10000.0, (2 * (i // 2)).astype(jnp.float32) / d_model)
    return jnp.where(i % 2 == 0, jnp.sin(angle), jnp.cos(angle)).astype(jnp.float32)


def positional_encode(x, pe, d_model, pos=0):
    L = x.shape[1]
    return x * math.sqrt(d_model) + pe[pos:pos + L][None, :, :]


def transformer_forward(params, cfg, src_ids, trg_ids, e_mask, d_mask):
    """training=True path: returns log-probabilities (B, S_trg, trg_vocab)."""
    D = cfg['d_model']
    B, Ss = src_ids.shape
    _, St = trg_ids.shape
    e_bias = mask_to_bias(e_mask, B, Ss)
    d_bias = mask_to_bias(d_mask, B, St)
    src = positional_encode(jnp.take(params['src_emb'], src_ids, axis=0), params['pe'], D)
    trg = positional_encode(jnp.take(params['trg_emb'], trg_ids, axis=0), params['pe'], D)
    e_out = encode(params['encoder'], src, e_bias, cfg)
    cross_kvs = precompute_cross_kv(params['decoder'], e_out)
    d_out = decode(params['decoder'], trg, cross_kvs, e_bias, d_bias, cfg)
    logp = proj_log_softmax(d_out.reshape(B * St, D), params['out_w'], params['out_b'])
    return logp.reshape(B, St, cfg['trg_vocab_size'])


def transformer_predict(params, cfg, src_ids, trg_ids, e_mask, limit):
    """training=False path (greedy _predict) with fixed shapes across steps.

    Cross-attention K/V of every decoder layer are projected once before the loop and
    reused each step.  The target buffer is padded to S0+limit; positions beyond the
    current length are excluded from decoder self-attention via an additive bias,
    reproducing the original variable-length, d_mask=None semantics.
    """
    # TODO(synk): per-layer self-attention KV cache (input_output_aliases) so each step
    # only computes attention for the newest token instead of re-running the full prefix.
    D = cfg['d_model']
    B, S0 = trg_ids.shape
    Ss = src_ids.shape[1]
    e_bias = mask_to_bias(e_mask, B, Ss)

    src = positional_encode(jnp.take(params['src_emb'], src_ids, axis=0), params['pe'], D)
    e_out = encode(params['encoder'], src, e_bias, cfg)
    cross_kvs = precompute_cross_kv(params['decoder'], e_out)

    S_tot = S0 + limit
    trg = positional_encode(jnp.take(params['trg_emb'], trg_ids, axis=0), params['pe'], D)
    buf = jnp.zeros((B, S_tot, D), jnp.float32)
    buf = jax.lax.dynamic_update_slice(buf, trg, (0, 0, 0))

    preds = []
    for step in range(limit):
        cur_len = S0 + step
        valid = jnp.arange(S_tot) < cur_len
        d_bias = jnp.broadcast_to(
            jnp.where(valid, 0.0, NEG_INF).astype(jnp.float32)[None, None, :],
            (B, 1, S_tot))
        out = decode(params['decoder'], buf, cross_kvs, e_bias, d_bias, cfg)
        last = out[:, cur_len - 1, :]                                   # newest token (B, D)
        logp = proj_log_softmax(last, params['out_w'], params['out_b'])
        preds.append(logp[:, None, :])
        nxt = jnp.argmax(logp, axis=-1)[:, None]
        nxt_e = jnp.take(params['trg_emb'], nxt, axis=0)                # (B, 1, D)
        # PyTorch _predict encodes the appended token at position step+1 (it assumes the
        # decode prefix is a single BOS token); reproduced verbatim (demo uses S0 == 1).
        nxt_e = positional_encode(nxt_e, params['pe'], D, pos=step + 1)
        buf = jax.lax.dynamic_update_slice(buf, nxt_e, (0, cur_len, 0))
    return jnp.concatenate(preds, axis=1)


# ----------------------------------------------------------------------------
# Deterministic parameter initialization (weights stored bf16, biases/LN f32)
# ----------------------------------------------------------------------------

def _w(key, shape, scale=0.05):
    return scale * jax.random.normal(key, shape, jnp.float32)


def _init_self_attn(key, D):
    ks = jax.random.split(key, 4)
    return dict(
        wqkv=jnp.concatenate([_w(ks[0], (D, D)), _w(ks[1], (D, D)), _w(ks[2], (D, D))],
                             axis=1).astype(jnp.bfloat16),
        bqkv=jnp.zeros((1, 3 * D), jnp.float32),
        w0=_w(ks[3], (D, D)).astype(jnp.bfloat16),
        b0=jnp.zeros((1, D), jnp.float32))


def _init_cross_attn(key, D):
    ks = jax.random.split(key, 4)
    return dict(
        wq=_w(ks[0], (D, D)).astype(jnp.bfloat16),
        bq=jnp.zeros((1, D), jnp.float32),
        wkv=jnp.concatenate([_w(ks[1], (D, D)), _w(ks[2], (D, D))],
                            axis=1).astype(jnp.bfloat16),
        bkv=jnp.zeros((1, 2 * D), jnp.float32),
        w0=_w(ks[3], (D, D)).astype(jnp.bfloat16),
        b0=jnp.zeros((1, D), jnp.float32))


def _init_ff(key, D, F):
    k1, k2 = jax.random.split(key)
    return dict(w1=_w(k1, (D, F)).astype(jnp.bfloat16), b1=jnp.zeros((1, F), jnp.float32),
                w2=_w(k2, (F, D)).astype(jnp.bfloat16), b2=jnp.zeros((1, D), jnp.float32))


def init_params(key, cfg, max_len):
    D, F = cfg['d_model'], cfg['d_ff']
    g = jnp.ones((1, D), jnp.float32)
    b = jnp.zeros((1, D), jnp.float32)
    keys = jax.random.split(key, 6)

    def enc_layer(k):
        k1, k2 = jax.random.split(k)
        return dict(ln1_g=g, ln1_b=b, attn=_init_self_attn(k1, D),
                    ln2_g=g, ln2_b=b, ff=_init_ff(k2, D, F))

    def dec_layer(k):
        k1, k2, k3 = jax.random.split(k, 3)
        return dict(ln1_g=g, ln1_b=b, self_attn=_init_self_attn(k1, D),
                    ln2_g=g, ln2_b=b, cross_attn=_init_cross_attn(k2, D),
                    ln3_g=g, ln3_b=b, ff=_init_ff(k3, D, F))

    enc_keys = jax.random.split(keys[0], cfg['num_layers'])
    dec_keys = jax.random.split(keys[1], cfg['num_layers'])
    return dict(
        src_emb=0.1 * jax.random.normal(keys[2], (cfg['src_vocab_size'], D), jnp.float32),
        trg_emb=0.1 * jax.random.normal(keys[3], (cfg['trg_vocab_size'], D), jnp.float32),
        pe=make_positional_encoding(max_len, D),
        encoder=dict(layers=[enc_layer(k) for k in enc_keys], ln_g=g, ln_b=b),
        decoder=dict(layers=[dec_layer(k) for k in dec_keys], ln_g=g, ln_b=b),
        out_w=_w(keys[4], (D, cfg['trg_vocab_size'])).astype(jnp.bfloat16),
        out_b=jnp.zeros((1, cfg['trg_vocab_size']), jnp.float32))


# ----------------------------------------------------------------------------
# Demo
# ----------------------------------------------------------------------------

if __name__ == "__main__":
    cfg = dict(src_vocab_size=50, trg_vocab_size=50, d_model=32, d_ff=64,
               num_heads=4, num_layers=2, d_k=8, drop_out_rate=0.0)
    B, S_SRC, S_TRG, MAX_LEN = 2, 8, 8, 64

    key = jax.random.PRNGKey(0)
    kp, ks, kt = jax.random.split(key, 3)
    params = init_params(kp, cfg, MAX_LEN)

    src_ids = jax.random.randint(ks, (B, S_SRC), 0, cfg['src_vocab_size'], dtype=jnp.int32)
    trg_ids = jax.random.randint(kt, (B, S_TRG), 0, cfg['trg_vocab_size'], dtype=jnp.int32)
    e_mask = jnp.ones((B, 1, S_SRC), jnp.float32)                         # padding mask (all valid)
    d_mask = jnp.tril(jnp.ones((S_TRG, S_TRG), jnp.float32))[None].repeat(B, axis=0)  # no-peek

    # training=True path: log-softmax over target vocab
    logp = transformer_forward(params, cfg, src_ids, trg_ids, e_mask, d_mask)
    logp = jax.block_until_ready(logp)
    assert logp.shape == (B, S_TRG, cfg['trg_vocab_size'])
    assert bool(jnp.all(jnp.isfinite(logp)))
    assert bool(jnp.allclose(jnp.sum(jnp.exp(logp), axis=-1), 1.0, atol=1e-4))

    # training=False path (_predict greedy loop), starting from a single BOS-like token
    preds = transformer_predict(params, cfg, src_ids, trg_ids[:, :1], e_mask, limit=1)
    preds = jax.block_until_ready(preds)
    assert preds.shape == (B, 1, cfg['trg_vocab_size'])
    assert bool(jnp.all(jnp.isfinite(preds)))

    print("KERNEL_OK")
</pallas_src>

<mosaic_0001>
module attributes {stable_mosaic.version = 11 : i64} {
  func.func @k(%arg0: i32, %arg1: memref<8x128xf32, #tpu.memory_space<vmem>>, %arg2: memref<8x128xf32, #tpu.memory_space<vmem>>) attributes {dimension_semantics = [#tpu.dimension_semantics<arbitrary>], iteration_bounds = array<i64: 2>, scalar_prefetch = 0 : i64, scratch_operands = 0 : i64, tpu.core_type = #tpu.core_type<tc>, window_params = [{pipeline_mode = #tpu.pipeline_mode<synchronous>, transform_indices = @transform_0, window_bounds = array<i64: 8, 128>}, {transform_indices = @transform_1, window_bounds = array<i64: 8, 128>}]} {
    %c0 = arith.constant 0 : index
    %c0_0 = arith.constant 0 : index
    %0 = vector.load %arg1[%c0, %c0_0] : memref<8x128xf32, #tpu.memory_space<vmem>>, vector<8x128xf32>
    %cst = arith.constant 2.000000e+00 : f32
    %1 = vector.broadcast %cst : f32 to vector<8x128xf32>
    %2 = arith.mulf %0, %1 : vector<8x128xf32>
    %c0_1 = arith.constant 0 : index
    %c0_2 = arith.constant 0 : index
    %3 = vector.load %arg2[%c0_1, %c0_2] : memref<8x128xf32, #tpu.memory_space<vmem>>, vector<8x128xf32>
    tpu.vector_store %arg2[%c0_1, %c0_2], %2 {strides = array<i32>} : memref<8x128xf32, #tpu.memory_space<vmem>>, vector<8x128xf32>,
    return
  }
  func.func @transform_0(%arg0: i32) -> (i32, i32) {
    %c0_i32 = arith.constant 0 : i32
    %c0_i32_0 = arith.constant 0 : i32
    %c0_i32_1 = arith.constant 0 : i32
    return %c0_i32, %c0_i32_0 : i32, i32
  }
  func.func @transform_1(%arg0: i32) -> (i32, i32) {
    %c0_i32 = arith.constant 0 : i32
    %c0_i32_0 = arith.constant 0 : i32
    return %arg0, %c0_i32 : i32, i32
  }
}

module attributes {stable_mosaic.version = 11 : i64} {
  func.func @_self_attn_kernel(%arg0: i32, %arg1: memref<1x8x32xf32, #tpu.memory_space<vmem>>, %arg2: memref<1x1x8xf32, #tpu.memory_space<vmem>>, %arg3: memref<1x32xf32, #tpu.memory_space<vmem>>, %arg4: memref<1x32xf32, #tpu.memory_space<vmem>>, %arg5: memref<32x96xbf16, #tpu.memory_space<vmem>>, %arg6: memref<1x96xf32, #tpu.memory_space<vmem>>, %arg7: memref<32x32xbf16, #tpu.memory_space<vmem>>, %arg8: memref<1x32xf32, #tpu.memory_space<vmem>>, %arg9: memref<1x8x32xf32, #tpu.memory_space<vmem>>) attributes {dimension_semantics = [#tpu.dimension_semantics<parallel>], iteration_bounds = array<i64: 2>, scalar_prefetch = 0 : i64, scratch_operands = 0 : i64, tpu.core_type = #tpu.core_type<tc>, window_params = [{transform_indices = @transform_0, window_bounds = array<i64: 1, 8, 32>}, {transform_indices = @transform_1, window_bounds = array<i64: 1, 1, 8>}, {pipeline_mode = #tpu.pipeline_mode<synchronous>, transform_indices = @transform_2, window_bounds = array<i64: 1, 32>}, {pipeline_mode = #tpu.pipeline_mode<synchronous>, transform_indices = @transform_3, window_bounds = array<i64: 1, 32>}, {pipeline_mode = #tpu.pipeline_mode<synchronous>, transform_indices = @transform_4, window_bounds = array<i64: 32, 96>}, {pipeline_mode = #tpu.pipeline_mode<synchronous>, transform_indices = @transform_5, window_bounds = array<i64: 1, 96>}, {pipeline_mode = #tpu.pipeline_mode<synchronous>, transform_indices = @transform_6, window_bounds = array<i64: 32, 32>}, {pipeline_mode = #tpu.pipeline_mode<synchronous>, transform_indices = @transform_7, window_bounds = array<i64: 1, 32>}, {transform_indices = @transform_8, window_bounds = array<i64: 1, 8, 32>}]} {
    %c0 = arith.constant 0 : index
    %c0_0 = arith.constant 0 : index
    %c0_1 = arith.constant 0 : index
    %0 = vector.load %arg1[%c0, %c0_0, %c0_1] : memref<1x8x32xf32, #tpu.memory_space<vmem>>, vector<1x8x32xf32>
    %1 = vector.shape_cast %0 : vector<1x8x32xf32> to vector<8x32xf32>
    %c0_2 = arith.constant 0 : index
    %c0_3 = arith.constant 0 : index
    %2 = vector.load %arg3[%c0_2, %c0_3] : memref<1x32xf32, #tpu.memory_space<vmem>>, vector<1x32xf32>
    %c0_4 = arith.constant 0 : index
    %c0_5 = arith.constant 0 : index
    %3 = vector.load %arg4[%c0_4, %c0_5] : memref<1x32xf32, #tpu.memory_space<vmem>>, vector<1x32xf32>
    %cst = arith.constant dense<0.000000e+00> : vector<8xf32>
    %4 = vector.multi_reduction <add>, %1, %cst [1] : vector<8x32xf32> to vector<8xf32>
    %5 = vector.shape_cast %4 : vector<8xf32> to vector<8x1xf32>
    %cst_6 = arith.constant 3.200000e+01 : f32
    %6 = vector.broadcast %cst_6 : f32 to vector<8x1xf32>
    %7 = arith.divf %5, %6 : vector<8x1xf32>
    %8 = vector.broadcast %7 : vector<8x1xf32> to vector<8x32xf32>
    %9 = arith.subf %1, %8 : vector<8x32xf32>
    %10 = arith.mulf %9, %9 : vector<8x32xf32>
    %cst_7 = arith.constant dense<0.000000e+00> : vector<8xf32>
    %11 = vector.multi_reduction <add>, %10, %cst_7 [1] : vector<8x32xf32> to vector<8xf32>
    %12 = vector.shape_cast %11 : vector<8xf32> to vector<8x1xf32>
    %cst_8 = arith.constant 3.200000e+01 : f32
    %13 = vector.broadcast %cst_8 : f32 to vector<8x1xf32>
    %14 = arith.divf %12, %13 : vector<8x1xf32>
    %15 = vector.broadcast %7 : vector<8x1xf32> to vector<8x32xf32>
    %16 = arith.subf %1, %15 : vector<8x32xf32>
    %cst_9 = arith.constant 9.99999997E-7 : f32
    %17 = vector.broadcast %cst_9 : f32 to vector<8x1xf32>
    %18 = arith.addf %14, %17 : vector<8x1xf32>
    %19 = math.rsqrt %18 : vector<8x1xf32>
    %20 = vector.broadcast %19 : vector<8x1xf32> to vector<8x32xf32>
    %21 = arith.mulf %16, %20 : vector<8x32xf32>
    %22 = vector.broadcast %2 : vector<1x32xf32> to vector<8x32xf32>
    %23 = arith.mulf %21, %22 : vector<8x32xf32>
    %24 = vector.broadcast %3 : vector<1x32xf32> to vector<8x32xf32>
    %25 = arith.addf %23, %24 : vector<8x32xf32>
    %c0_10 = arith.constant 0 : index
    %c0_11 = arith.constant 0 : index
    %26 = vector.load %arg5[%c0_10, %c0_11] : memref<32x96xbf16, #tpu.memory_space<vmem>>, vector<32x96xbf16>
    %27 = arith.truncf %25 : vector<8x32xf32> to vector<8x32xbf16>
    %cst_12 = arith.constant dense<0.000000e+00> : vector<8x96xf32>
    %28 = tpu.matmul %27, %26, %cst_12 {dimension_numbers = #tpu.dot_dimension_numbers<[1], [0], [0], [1], [0, 0, 1, 1], [], []>} : vector<8x32xbf16>, vector<32x96xbf16>, vector<8x96xf32> -> vector<8x96xf32>
    %c0_13 = arith.constant 0 : index
    %c0_14 = arith.constant 0 : index
    %29 = vector.load %arg6[%c0_13, %c0_14] : memref<1x96xf32, #tpu.memory_space<vmem>>, vector<1x96xf32>
    %30 = vector.broadcast %29 : vector<1x96xf32> to vector<8x96xf32>
    %31 = arith.addf %28, %30 : vector<8x96xf32>
    %32 = vector.extract_strided_slice %31 {offsets = [0, 0], sizes = [8, 8], strides = [1, 1]} : vector<8x96xf32> to vector<8x8xf32>
    %33 = vector.extract_strided_slice %31 {offsets = [0, 8], sizes = [8, 8], strides = [1, 1]} : vector<8x96xf32> to vector<8x8xf32>
    %34 = vector.extract_strided_slice %31 {offsets = [0, 16], sizes = [8, 8], strides = [1, 1]} : vector<8x96xf32> to vector<8x8xf32>
    %35 = vector.extract_strided_slice %31 {offsets = [0, 24], sizes = [8, 8], strides = [1, 1]} : vector<8x96xf32> to vector<8x8xf32>
    %36 = vector.shape_cast %32 : vector<8x8xf32> to vector<1x8x8xf32>
    %37 = vector.shape_cast %33 : vector<8x8xf32> to vector<1x8x8xf32>
    %38 = vector.shape_cast %34 : vector<8x8xf32> to vector<1x8x8xf32>
    %39 = vector.shape_cast %35 : vector<8x8xf32> to vector<1x8x8xf32>
    %40 = tpu.concatenate %36, %37, %38, %39 in 0 : vector<1x8x8xf32>, vector<1x8x8xf32>, vector<1x8x8xf32>, vector<1x8x8xf32> -> vector<4x8x8xf32>
    %41 = vector.extract_strided_slice %31 {offsets = [0, 32], sizes = [8, 8], strides = [1, 1]} : vector<8x96xf32> to vector<8x8xf32>
    %42 = vector.extract_strided_slice %31 {offsets = [0, 40], sizes = [8, 8], strides = [1, 1]} : vector<8x96xf32> to vector<8x8xf32>
    %43 = vector.extract_strided_slice %31 {offsets = [0, 48], sizes = [8, 8], strides = [1, 1]} : vector<8x96xf32> to vector<8x8xf32>
    %44 = vector.extract_strided_slice %31 {offsets = [0, 56], sizes = [8, 8], strides = [1, 1]} : vector<8x96xf32> to vector<8x8xf32>
    %45 = vector.shape_cast %41 : vector<8x8xf32> to vector<1x8x8xf32>
    %46 = vector.shape_cast %42 : vector<8x8xf32> to vector<1x8x8xf32>
    %47 = vector.shape_cast %43 : vector<8x8xf32> to vector<1x8x8xf32>
    %48 = vector.shape_cast %44 : vector<8x8xf32> to vector<1x8x8xf32>
    %49 = tpu.concatenate %45, %46, %47, %48 in 0 : vector<1x8x8xf32>, vector<1x8x8xf32>, vector<1x8x8xf32>, vector<1x8x8xf32> -> vector<4x8x8xf32>
    %50 = vector.extract_strided_slice %31 {offsets = [0, 64], sizes = [8, 8], strides = [1, 1]} : vector<8x96xf32> to vector<8x8xf32>
    %51 = vector.extract_strided_slice %31 {offsets = [0, 72], sizes = [8, 8], strides = [1, 1]} : vector<8x96xf32> to vector<8x8xf32>
    %52 = vector.extract_strided_slice %31 {offsets = [0, 80], sizes = [8, 8], strides = [1, 1]} : vector<8x96xf32> to vector<8x8xf32>
    %53 = vector.extract_strided_slice %31 {offsets = [0, 88], sizes = [8, 8], strides = [1, 1]} : vector<8x96xf32> to vector<8x8xf32>
    %54 = vector.shape_cast %50 : vector<8x8xf32> to vector<1x8x8xf32>
    %55 = vector.shape_cast %51 : vector<8x8xf32> to vector<1x8x8xf32>
    %56 = vector.shape_cast %52 : vector<8x8xf32> to vector<1x8x8xf32>
    %57 = vector.shape_cast %53 : vector<8x8xf32> to vector<1x8x8xf32>
    %58 = tpu.concatenate %54, %55, %56, %57 in 0 : vector<1x8x8xf32>, vector<1x8x8xf32>, vector<1x8x8xf32>, vector<1x8x8xf32> -> vector<4x8x8xf32>
    %c0_15 = arith.constant 0 : index
    %c0_16 = arith.constant 0 : index
    %c0_17 = arith.constant 0 : index
    %59 = vector.load %arg2[%c0_15, %c0_16, %c0_17] : memref<1x1x8xf32, #tpu.memory_space<vmem>>, vector<1x1x8xf32>
    %60 = vector.shape_cast %59 : vector<1x1x8xf32> to vector<1x8xf32>
    %cst_18 = arith.constant 0.353553385 : f32
    %61 = vector.broadcast %cst_18 : f32 to vector<4x8x8xf32>
    %62 = arith.mulf %40, %61 : vector<4x8x8xf32>
    %63 = arith.truncf %62 : vector<4x8x8xf32> to vector<4x8x8xbf16>
    %64 = arith.truncf %49 : vector<4x8x8xf32> to vector<4x8x8xbf16>
    %65 = arith.truncf %58 : vector<4x8x8xf32> to vector<4x8x8xbf16>
    "tpu.trace_start"() <{level = 10 : i32, message = "hqd,hkd->hqk"}> : () -> ()
    %cst_19 = arith.constant dense<0.000000e+00> : vector<4x8x8xf32>
    %66 = tpu.matmul %63, %64, %cst_19 {dimension_numbers = #tpu.dot_dimension_numbers<[2], [2], [1], [1], [0, 0, 0, 1, 1, 1], [0], [0]>} : vector<4x8x8xbf16>, vector<4x8x8xbf16>, vector<4x8x8xf32> -> vector<4x8x8xf32>
    "tpu.trace_stop"() : () -> ()
    %67 = vector.shape_cast %60 : vector<1x8xf32> to vector<1x1x8xf32>
    %68 = vector.broadcast %67 : vector<1x1x8xf32> to vector<4x8x8xf32>
    %69 = arith.addf %66, %68 : vector<4x8x8xf32>
    %cst_20 = arith.constant dense<0xFF800000> : vector<4x8xf32>
    %70 = vector.multi_reduction <maximumf>, %69, %cst_20 [2] : vector<4x8x8xf32> to vector<4x8xf32>
    %71 = vector.shape_cast %70 : vector<4x8xf32> to vector<4x8x1xf32>
    %72 = vector.broadcast %71 : vector<4x8x1xf32> to vector<4x8x8xf32>
    %73 = arith.subf %69, %72 : vector<4x8x8xf32>
    %74 = math.exp %73 : vector<4x8x8xf32>
    %cst_21 = arith.constant dense<0.000000e+00> : vector<4x8xf32>
    %75 = vector.multi_reduction <add>, %74, %cst_21 [2] : vector<4x8x8xf32> to vector<4x8xf32>
    %76 = vector.shape_cast %75 : vector<4x8xf32> to vector<4x8x1xf32>
    %77 = vector.broadcast %76 : vector<4x8x1xf32> to vector<4x8x8xf32>
    %78 = arith.divf %74, %77 : vector<4x8x8xf32>
    %79 = arith.truncf %78 : vector<4x8x8xf32> to vector<4x8x8xbf16>
    "tpu.trace_start"() <{level = 10 : i32, message = "hqk,hkd->hqd"}> : () -> ()
    %cst_22 = arith.constant dense<0.000000e+00> : vector<4x8x8xf32>
    %80 = tpu.matmul %79, %65, %cst_22 {dimension_numbers = #tpu.dot_dimension_numbers<[2], [1], [1], [2], [0, 0, 0, 1, 1, 2], [0], [0]>} : vector<4x8x8xbf16>, vector<4x8x8xbf16>, vector<4x8x8xf32> -> vector<4x8x8xf32>
    "tpu.trace_stop"() : () -> ()
    %81 = vector.extract_strided_slice %80 {offsets = [0, 0, 0], sizes = [1, 8, 8], strides = [1, 1, 1]} : vector<4x8x8xf32> to vector<1x8x8xf32>
    %82 = vector.shape_cast %81 : vector<1x8x8xf32> to vector<8x8xf32>
    %83 = vector.extract_strided_slice %80 {offsets = [1, 0, 0], sizes = [1, 8, 8], strides = [1, 1, 1]} : vector<4x8x8xf32> to vector<1x8x8xf32>
    %84 = vector.shape_cast %83 : vector<1x8x8xf32> to vector<8x8xf32>
    %85 = vector.extract_strided_slice %80 {offsets = [2, 0, 0], sizes = [1, 8, 8], strides = [1, 1, 1]} : vector<4x8x8xf32> to vector<1x8x8xf32>
    %86 = vector.shape_cast %85 : vector<1x8x8xf32> to vector<8x8xf32>
    %87 = vector.extract_strided_slice %80 {offsets = [3, 0, 0], sizes = [1, 8, 8], strides = [1, 1, 1]} : vector<4x8x8xf32> to vector<1x8x8xf32>
    %88 = vector.shape_cast %87 : vector<1x8x8xf32> to vector<8x8xf32>
    %89 = tpu.concatenate %82, %84, %86, %88 in 1 : vector<8x8xf32>, vector<8x8xf32>, vector<8x8xf32>, vector<8x8xf32> -> vector<8x32xf32>
    %c0_23 = arith.constant 0 : index
    %c0_24 = arith.constant 0 : index
    %90 = vector.load %arg7[%c0_23, %c0_24] : memref<32x32xbf16, #tpu.memory_space<vmem>>, vector<32x32xbf16>
    %91 = arith.truncf %89 : vector<8x32xf32> to vector<8x32xbf16>
    %cst_25 = arith.constant dense<0.000000e+00> : vector<8x32xf32>
    %92 = tpu.matmul %91, %90, %cst_25 {dimension_numbers = #tpu.dot_dimension_numbers<[1], [0], [0], [1], [0, 0, 1, 1], [], []>} : vector<8x32xbf16>, vector<32x32xbf16>, vector<8x32xf32> -> vector<8x32xf32>
    %93 = arith.addf %1, %92 : vector<8x32xf32>
    %c0_26 = arith.constant 0 : index
    %c0_27 = arith.constant 0 : index
    %94 = vector.load %arg8[%c0_26, %c0_27] : memref<1x32xf32, #tpu.memory_space<vmem>>, vector<1x32xf32>
    %95 = vector.broadcast %94 : vector<1x32xf32> to vector<8x32xf32>
    %96 = arith.addf %93, %95 : vector<8x32xf32>
    %c0_28 = arith.constant 0 : index
    %c0_29 = arith.constant 0 : index
    %c0_30 = arith.constant 0 : index
    %97 = vector.load %arg9[%c0_28, %c0_29, %c0_30] : memref<1x8x32xf32, #tpu.memory_space<vmem>>, vector<1x8x32xf32>
    %98 = vector.shape_cast %97 : vector<1x8x32xf32> to vector<8x32xf32>
    %99 = vector.shape_cast %96 : vector<8x32xf32> to vector<1x8x32xf32>
    tpu.vector_store %arg9[%c0_28, %c0_29, %c0_30], %99 {strides = array<i32>} : memref<1x8x32xf32, #tpu.memory_space<vmem>>, vector<1x8x32xf32>,
    return
  }
  func.func @transform_0(%arg0: i32) -> (i32, i32, i32) {
    %c0_i32 = arith.constant 0 : i32
    %c0_i32_0 = arith.constant 0 : i32
    %c0_i32_1 = arith.constant 0 : i32
    return %arg0, %c0_i32, %c0_i32_0 : i32, i32, i32
  }
  func.func @transform_1(%arg0: i32) -> (i32, i32, i32) {
    %c0_i32 = arith.constant 0 : i32
    %c0_i32_0 = arith.constant 0 : i32
    %c0_i32_1 = arith.constant 0 : i32
    return %arg0, %c0_i32, %c0_i32_0 : i32, i32, i32
  }
  func.func @transform_2(%arg0: i32) -> (i32, i32) {
    %c0_i32 = arith.constant 0 : i32
    %c0_i32_0 = arith.constant 0 : i32
    %c0_i32_1 = arith.constant 0 : i32
    return %c0_i32, %c0_i32_0 : i32, i32
  }
  func.func @transform_3(%arg0: i32) -> (i32, i32) {
    %c0_i32 = arith.constant 0 : i32
    %c0_i32_0 = arith.constant 0 : i32
    %c0_i32_1 = arith.constant 0 : i32
    return %c0_i32, %c0_i32_0 : i32, i32
  }
  func.func @transform_4(%arg0: i32) -> (i32, i32) {
    %c0_i32 = arith.constant 0 : i32
    %c0_i32_0 = arith.constant 0 : i32
    %c0_i32_1 = arith.constant 0 : i32
    return %c0_i32, %c0_i32_0 : i32, i32
  }
  func.func @transform_5(%arg0: i32) -> (i32, i32) {
    %c0_i32 = arith.constant 0 : i32
    %c0_i32_0 = arith.constant 0 : i32
    %c0_i32_1 = arith.constant 0 : i32
    return %c0_i32, %c0_i32_0 : i32, i32
  }
  func.func @transform_6(%arg0: i32) -> (i32, i32) {
    %c0_i32 = arith.constant 0 : i32
    %c0_i32_0 = arith.constant 0 : i32
    %c0_i32_1 = arith.constant 0 : i32
    return %c0_i32, %c0_i32_0 : i32, i32
  }
  func.func @transform_7(%arg0: i32) -> (i32, i32) {
    %c0_i32 = arith.constant 0 : i32
    %c0_i32_0 = arith.constant 0 : i32
    %c0_i32_1 = arith.constant 0 : i32
    return %c0_i32, %c0_i32_0 : i32, i32
  }
  func.func @transform_8(%arg0: i32) -> (i32, i32, i32) {
    %c0_i32 = arith.constant 0 : i32
    %c0_i32_0 = arith.constant 0 : i32
    %c0_i32_1 = arith.constant 0 : i32
    return %arg0, %c0_i32, %c0_i32_0 : i32, i32, i32
  }
}

</mosaic_0001>

<llo_original>
// kernel: tpu_custom_call.1
$region0: #{tpu_custom_call.1}
  #allocation0 [shape = 'u32[]', space=smem, size = 0x4, offset = 0x4, fixed_abs, tag = 'smem constant byte address 0x4 - core index']
  #allocation1 [shape = 'u32[144,128]{1,0:T(1,128)}', space=vmem, size = 0x12000, scoped, tag = 'internal scratch']
  %s0 = inlined_call_operand.hbm [shape: f32[8,128], index: 0, kind: input, shape index: {}]
  %s1 = inlined_call_operand.hbm [shape: f32[16,128], index: 1, kind: output, shape index: {}]
  %s2 = sld [smem:[#allocation0]]
  $region41: #{tpu_custom_call.1} parent=0
    _
  %s4 = ssub.s32 1, %s2
  %s5 = scalar_select 0, %s4, %s2
  $region1: #{tpu_custom_call.1} parent=0
    #allocation2 [shape = 'u8[4096]{0}', space=vmem, size = 0x1000, scoped, tag = 'input window, operand 0, single buffered']
    #allocation3 [shape = 's32[2]{0}', space=sflag, size = 0x8, scoped, tag = 'scoped memory for tpu_custom_call.1']
    #allocation4 [shape = 's32[2]{0}', space=sflag, size = 0x8, scoped, tag = 'scoped memory for tpu_custom_call.1']
    #allocation5 [shape = 'u8[8192]{0}', space=vmem, size = 0x2000, scoped, tag = 'output window, operand 0']
    %6 = vsyncpa [#allocation3], 0
    %7 = vsyncpa [#allocation4], 0
    %s8 = scalar_lea.sflag [#allocation4], 1
    %9 = vsyncpa %s8, 0
    loop: start=0, step=1, limit=4
    $region2: #{tpu_custom_call.1} parent=1 // loop_pre_header
      _
    $region3: #{tpu_custom_call.1} parent=1 // loop_header
      %s11 = sphi 0, %s15
      %p12 = scmp.ge.s32.totalorder %s11, 4
      %s19 = sphi 0, %s19
      %s21 = sphi 0, %s19
      %s22 = sphi 0, %s21
      %s36 = sphi 0, %s22
      %s42 = sphi 0, %s44
      %s45 = sphi 0, %s42
      %s46 = sphi 0, %s45
      %s62 = sphi 0, %s46
    $region4: #{tpu_custom_call.1} parent=1 // loop_header_branch
      %14 = sbr.rel (%p12) target = $region8
    $region5: #{tpu_custom_call.1} parent=1 // loop_body
      %s16 = ssub.s32 %s11, 1
      %s17 = ssub.s32 %s11, 2
      %s18 = sadd.s32 %s11, 1
      %s20 = sadd.s32 %s19, 1
      %p23 = scmp.eq.s32.totalorder %s11, 1
      %p24 = scmp.ne.s32.totalorder %s19, %s21
      %p25 = scmp.eq.s32.totalorder %s11, 0
      %p26 = por %p24, %p25
      %p27 = scmp.ne.s32.totalorder %s19, %s21
      %p28 = scmp.eq.s32.totalorder %s16, 1
      %p29 = por %p27, %p28
      %p30 = scmp.ne.s32.totalorder %s21, %s22
      %p31 = scmp.eq.s32.totalorder %s16, 0
      %p32 = por %p30, %p31
      %p33 = scmp.ne.s32.totalorder %s21, %s22
      %p34 = scmp.eq.s32.totalorder %s17, 1
      %p35 = por %p33, %p34
      %p37 = scmp.ne.s32.totalorder %s22, %s36
      %p38 = scmp.eq.s32.totalorder %s17, 0
      %p39 = por %p37, %p38
      %s40 = ssub.s32 %s11, %s18
      %p41 = scmp.eq.s32.totalorder %s40, 0
      %s43 = sadd.s32 %s42, 1
      %s44 = scalar_select %p41, %s42, %s43
      %p47 = pneg %p41
      %p48 = scmp.eq.s32.totalorder %s11, 1
      %p49 = por %p47, %p48
      %p50 = scmp.ne.s32.totalorder %s42, %s45
      %p51 = scmp.eq.s32.totalorder %s11, 0
      %p52 = por %p50, %p51
      %p53 = scmp.ne.s32.totalorder %s42, %s45
      %p54 = scmp.eq.s32.totalorder %s16, 1
      %p55 = por %p53, %p54
      %p56 = scmp.ne.s32.totalorder %s45, %s46
      %p57 = scmp.eq.s32.totalorder %s16, 0
      %p58 = por %p56, %p57
      %p59 = scmp.ne.s32.totalorder %s45, %s46
      %p60 = scmp.eq.s32.totalorder %s17, 1
      %p61 = por %p59, %p60
      %p63 = scmp.ne.s32.totalorder %s46, %s62
      %p64 = scmp.eq.s32.totalorder %s17, 0
      %p65 = por %p63, %p64
      %p66 = scmp.le.s32.totalorder 1, %s11
      %p67 = scmp.lt.s32.totalorder %s11, 3
      %p68 = pnand %p66, %p67
      %p69 = pneg %p68
      // Predicated region
      $region9: #{tpu_custom_call.1} parent=5 // pred_check
        _
      $region10: #{tpu_custom_call.1} parent=5 // pred_check_branch
        %71 = sbr.rel (%p68) target = $region12
      $region11: #{tpu_custom_call.1} parent=5 // pred_region
        %s72 = ssub.s32 %s11, 1
        // Predicated region
        $region13: #{tpu_custom_call.1} parent=11 // pred_check
          %p73 = pneg %p32
        $region14: #{tpu_custom_call.1} parent=11 // pred_check_branch
          %75 = sbr.rel (%p73) target = $region16
        $region15: #{tpu_custom_call.1} parent=11 // pred_region
          %s77 = ssub.s32 128, 128
          %78 = vsyncadd [#allocation3], %s77
          %s80 = sshll.u32 [#allocation2], 4
          %s81 = int_to_ptr.vmem [resolvable:$true] %s80
          %83 = dma.hbm_to_vmem [thread:$0]  %s0, 128, %s81, [#allocation3]
        $region16: #{tpu_custom_call.1} parent=11 // pred_fallthru
          _
      $region12: #{tpu_custom_call.1} parent=5 // pred_fallthru
        _
      %p84 = scmp.lt.s32.totalorder %s11, 2
      // Predicated region
      $region17: #{tpu_custom_call.1} parent=5 // pred_check
        %p85 = pneg %p84
      $region18: #{tpu_custom_call.1} parent=5 // pred_check_branch
        %87 = sbr.rel (%p85) target = $region20
      $region19: #{tpu_custom_call.1} parent=5 // pred_region
        _
      $region20: #{tpu_custom_call.1} parent=5 // pred_fallthru
        _
      %p88 = scmp.le.s32.totalorder 1, %s11
      %p89 = scmp.lt.s32.totalorder %s11, 3
      %p90 = pnand %p88, %p89
      %p91 = pneg %p90
      // Predicated region
      $region21: #{tpu_custom_call.1} parent=5 // pred_check
        _
      $region22: #{tpu_custom_call.1} parent=5 // pred_check_branch
        %93 = sbr.rel (%p90) target = $region24
      $region23: #{tpu_custom_call.1} parent=5 // pred_region
        %s94 = ssub.s32 %s11, 1
        // Predicated region
        $region25: #{tpu_custom_call.1} parent=23 // pred_check
          %p95 = pneg %p32
        $region26: #{tpu_custom_call.1} parent=23 // pred_check_branch
          %97 = sbr.rel (%p95) target = $region28
        $region27: #{tpu_custom_call.1} parent=23 // pred_region
          %98 = dma.done [#allocation3], 128
        $region28: #{tpu_custom_call.1} parent=23 // pred_fallthru
          _
        %p99 = pneg %p32
        %p100 = pneg %p29
        %p101 = pneg %p58
        %p102 = pneg %p55
        %s103 = sand.u32 %s45, 1
        %s104 = scalar_lea.sflag [#allocation4], %s103
        %s105 = sand.u32 %s45, 1
        %s106 = smul.addr %s105, 8
        %s107 = scalar_lea.vmem [#allocation5], %s106
        %v108 = vld [vmem:[#allocation2] sm:$0xff]
        %v109 = vmul.f32 %v108, 2.0
        %110 = vst [vmem:[%s107] sm:$0xff] %v109
        %s111 = sand.u32 %s45, 1
        %s112 = scalar_lea.sflag [#allocation4], %s111
        %s113 = sand.u32 %s45, 1
        %s114 = smul.addr %s113, 8
        %s115 = scalar_lea.vmem [#allocation5], %s114
        // Predicated region
        $region29: #{tpu_custom_call.1} parent=23 // pred_check
          %p116 = pneg %p55
        $region30: #{tpu_custom_call.1} parent=23 // pred_check_branch
          %118 = sbr.rel (%p116) target = $region32
        $region31: #{tpu_custom_call.1} parent=23 // pred_region
          %s120 = ssub.s32 128, 128
          %121 = vsyncadd %s112, %s120
          %s122 = smul.addr %s16, 128
          %s123 = scalar_lea.hbm %s1, %s122
          %s125 = sshll.u32 %s115, 4
          %s126 = int_to_ptr.vmem [resolvable:$true] %s125
          %128 = dma.vmem_to_hbm [thread:$0]  %s126, 128, %s123, %s112
        $region32: #{tpu_custom_call.1} parent=23 // pred_fallthru
          _
      $region24: #{tpu_custom_call.1} parent=5 // pred_fallthru
        _
      %p129 = scmp.le.s32.totalorder 2, %s11
      // Predicated region
      $region33: #{tpu_custom_call.1} parent=5 // pred_check
        %p130 = pneg %p129
      $region34: #{tpu_custom_call.1} parent=5 // pred_check_branch
        %132 = sbr.rel (%p130) target = $region36
      $region35: #{tpu_custom_call.1} parent=5 // pred_region
        %s133 = ssub.s32 %s11, 2
        // Predicated region
        $region37: #{tpu_custom_call.1} parent=35 // pred_check
          %p134 = pneg %p61
        $region38: #{tpu_custom_call.1} parent=35 // pred_check_branch
          %136 = sbr.rel (%p134) target = $region40
        $region39: #{tpu_custom_call.1} parent=35 // pred_region
          %s137 = sand.u32 %s46, 1
          %s138 = scalar_lea.sflag [#allocation4], %s137
          %s139 = sand.u32 %s46, 1
          %s140 = smul.addr %s139, 8
          %s141 = scalar_lea.vmem [#allocation5], %s140
          %142 = dma.done %s138, 128
        $region40: #{tpu_custom_call.1} parent=35 // pred_fallthru
          _
      $region36: #{tpu_custom_call.1} parent=5 // pred_fallthru
        _
    $region6: #{tpu_custom_call.1} parent=1 // loop_footer
      %s15 = sadd.s32 1, %s11
    $region7: #{tpu_custom_call.1} parent=1 // loop_footer_branch
      %10 = sbr.rel target = $region3
    $region8: #{tpu_custom_call.1} parent=1 // loop_exit
      _
    %143 = vsyncpa [#allocation3], 1
    %s144 = scalar_lea.sflag [#allocation3], 1
    %145 = vsyncpa %s144, 1
    %146 = vsyncpa [#allocation4], 1
    %s147 = scalar_lea.sflag [#allocation4], 1
    %148 = vsyncpa %s147, 1

// kernel: tpu_custom_call.1
$region0: #{tpu_custom_call.1}
  #allocation0 [shape = 'u32[]', space=smem, size = 0x4, offset = 0x4, fixed_abs, tag = 'smem constant byte address 0x4 - core index']
  #allocation1 [shape = 'u32[144,128]{1,0:T(1,128)}', space=vmem, size = 0x12000, scoped, tag = 'internal scratch']
  %s0 = inlined_call_operand.hbm [shape: f32[2,8,32], index: 0, kind: input, shape index: {}]
  %s1 = inlined_call_operand.vmem [shape: f32[2,1,8], index: 1, kind: input, shape index: {}]
  %s2 = inlined_call_operand.vmem [shape: f32[1,32], index: 2, kind: input, shape index: {}]
  %s3 = inlined_call_operand.vmem [shape: f32[1,32], index: 3, kind: input, shape index: {}]
  %s4 = inlined_call_operand.hbm [shape: bf16[32,96], index: 4, kind: input, shape index: {}]
  %s5 = inlined_call_operand.vmem [shape: f32[1,96], index: 5, kind: input, shape index: {}]
  %s6 = inlined_call_operand.vmem [shape: bf16[32,32], index: 6, kind: input, shape index: {}]
  %s7 = inlined_call_operand.vmem [shape: f32[1,32], index: 7, kind: input, shape index: {}]
  %s8 = inlined_call_operand.hbm [shape: f32[2,8,32], index: 8, kind: output, shape index: {}]
  %s9 = sld [smem:[#allocation0]]
  $region73: #{tpu_custom_call.1} parent=0
    _
  %s11 = ssub.s32 1, %s9
  %s12 = scalar_select 0, %s11, %s9
  $region1: #{tpu_custom_call.1} parent=0
    #allocation2 [shape = 'u8[8192]{0}', space=vmem, size = 0x2000, scoped, tag = 'input window, operand 0']
    #allocation3 [shape = 's32[2]{0}', space=sflag, size = 0x8, scoped, tag = 'scoped memory for tpu_custom_call.1']
    #allocation4 [shape = 's32[2]{0}', space=sflag, size = 0x8, scoped, tag = 'scoped memory for tpu_custom_call.1']
    #allocation5 [shape = 'u8[8192]{0}', space=vmem, size = 0x2000, scoped, tag = 'input window, operand 4, single buffered']
    #allocation6 [shape = 's32[1]{0}', space=sflag, size = 0x4, scoped, tag = 'scoped memory for tpu_custom_call.1']
    #allocation7 [shape = 'u8[8192]{0}', space=vmem, size = 0x2000, scoped, tag = 'output window, operand 0']
    %13 = vsyncpa [#allocation3], 0
    %s14 = scalar_lea.sflag [#allocation3], 1
    %15 = vsyncpa %s14, 0
    %16 = vsyncpa [#allocation6], 0
    %17 = vsyncpa [#allocation4], 0
    %s18 = scalar_lea.sflag [#allocation4], 1
    %19 = vsyncpa %s18, 0
    loop: start=0, step=1, limit=4
    $region2: #{tpu_custom_call.1} parent=1 // loop_pre_header
      _
    $region3: #{tpu_custom_call.1} parent=1 // loop_header
      %s21 = sphi 0, %s25
      %p22 = scmp.ge.s32.totalorder %s21, 4
      %s31 = sphi 0, %s33
      %s34 = sphi 0, %s31
      %s35 = sphi 0, %s34
      %s51 = sphi 0, %s35
      %s57 = sphi 0, %s59
      %s60 = sphi 0, %s57
      %s61 = sphi 0, %s60
      %s77 = sphi 0, %s61
      %s81 = sphi 0, %s81
      %s83 = sphi 0, %s81
      %s84 = sphi 0, %s83
      %s98 = sphi 0, %s84
      %s102 = sphi 0, %s102
      %s104 = sphi 0, %s102
      %s105 = sphi 0, %s104
      %s119 = sphi 0, %s105
      %s123 = sphi 0, %s123
      %s125 = sphi 0, %s123
      %s126 = sphi 0, %s125
      %s140 = sphi 0, %s126
      %s144 = sphi 0, %s144
      %s146 = sphi 0, %s144
      %s147 = sphi 0, %s146
      %s161 = sphi 0, %s147
      %s165 = sphi 0, %s165
      %s167 = sphi 0, %s165
      %s168 = sphi 0, %s167
      %s182 = sphi 0, %s168
      %s186 = sphi 0, %s186
      %s188 = sphi 0, %s186
      %s189 = sphi 0, %s188
      %s203 = sphi 0, %s189
      %s209 = sphi 0, %s211
      %s212 = sphi 0, %s209
      %s213 = sphi 0, %s212
      %s229 = sphi 0, %s213
    $region4: #{tpu_custom_call.1} parent=1 // loop_header_branch
      %24 = sbr.rel (%p22) target = $region8
    $region5: #{tpu_custom_call.1} parent=1 // loop_body
      %s26 = ssub.s32 %s21, 1
      %s27 = ssub.s32 %s21, 2
      %s28 = sadd.s32 %s21, 1
      %s29 = ssub.s32 %s21, %s28
      %p30 = scmp.eq.s32.totalorder %s29, 0
      %s32 = sadd.s32 %s31, 1
      %s33 = scalar_select %p30, %s31, %s32
      %p36 = pneg %p30
      %p37 = scmp.eq.s32.totalorder %s21, 1
      %p38 = por %p36, %p37
      %p39 = scmp.ne.s32.totalorder %s31, %s34
      %p40 = scmp.eq.s32.totalorder %s21, 0
      %p41 = por %p39, %p40
      %p42 = scmp.ne.s32.totalorder %s31, %s34
      %p43 = scmp.eq.s32.totalorder %s26, 1
      %p44 = por %p42, %p43
      %p45 = scmp.ne.s32.totalorder %s34, %s35
      %p46 = scmp.eq.s32.totalorder %s26, 0
      %p47 = por %p45, %p46
      %p48 = scmp.ne.s32.totalorder %s34, %s35
      %p49 = scmp.eq.s32.totalorder %s27, 1
      %p50 = por %p48, %p49
      %p52 = scmp.ne.s32.totalorder %s35, %s51
      %p53 = scmp.eq.s32.totalorder %s27, 0
      %p54 = por %p52, %p53
      %s55 = ssub.s32 %s21, %s28
      %p56 = scmp.eq.s32.totalorder %s55, 0
      %s58 = sadd.s32 %s57, 1
      %s59 = scalar_select %p56, %s57, %s58
      %p62 = pneg %p56
      %p63 = scmp.eq.s32.totalorder %s21, 1
      %p64 = por %p62, %p63
      %p65 = scmp.ne.s32.totalorder %s57, %s60
      %p66 = scmp.eq.s32.totalorder %s21, 0
      %p67 = por %p65, %p66
      %p68 = scmp.ne.s32.totalorder %s57, %s60
      %p69 = scmp.eq.s32.totalorder %s26, 1
      %p70 = por %p68, %p69
      %p71 = scmp.ne.s32.totalorder %s60, %s61
      %p72 = scmp.eq.s32.totalorder %s26, 0
      %p73 = por %p71, %p72
      %p74 = scmp.ne.s32.totalorder %s60, %s61
      %p75 = scmp.eq.s32.totalorder %s27, 1
      %p76 = por %p74, %p75
      %p78 = scmp.ne.s32.totalorder %s61, %s77
      %p79 = scmp.eq.s32.totalorder %s27, 0
      %p80 = por %p78, %p79
      %s82 = sadd.s32 %s81, 1
      %p85 = scmp.eq.s32.totalorder %s21, 1
      %p86 = scmp.ne.s32.totalorder %s81, %s83
      %p87 = scmp.eq.s32.totalorder %s21, 0
      %p88 = por %p86, %p87
      %p89 = scmp.ne.s32.totalorder %s81, %s83
      %p90 = scmp.eq.s32.totalorder %s26, 1
      %p91 = por %p89, %p90
      %p92 = scmp.ne.s32.totalorder %s83, %s84
      %p93 = scmp.eq.s32.totalorder %s26, 0
      %p94 = por %p92, %p93
      %p95 = scmp.ne.s32.totalorder %s83, %s84
      %p96 = scmp.eq.s32.totalorder %s27, 1
      %p97 = por %p95, %p96
      %p99 = scmp.ne.s32.totalorder %s84, %s98
      %p100 = scmp.eq.s32.totalorder %s27, 0
      %p101 = por %p99, %p100
      %s103 = sadd.s32 %s102, 1
      %p106 = scmp.eq.s32.totalorder %s21, 1
      %p107 = scmp.ne.s32.totalorder %s102, %s104
      %p108 = scmp.eq.s32.totalorder %s21, 0
      %p109 = por %p107, %p108
      %p110 = scmp.ne.s32.totalorder %s102, %s104
      %p111 = scmp.eq.s32.totalorder %s26, 1
      %p112 = por %p110, %p111
      %p113 = scmp.ne.s32.totalorder %s104, %s105
      %p114 = scmp.eq.s32.totalorder %s26, 0
      %p115 = por %p113, %p114
      %p116 = scmp.ne.s32.totalorder %s104, %s105
      %p117 = scmp.eq.s32.totalorder %s27, 1
      %p118 = por %p116, %p117
      %p120 = scmp.ne.s32.totalorder %s105, %s119
      %p121 = scmp.eq.s32.totalorder %s27, 0
      %p122 = por %p120, %p121
      %s124 = sadd.s32 %s123, 1
      %p127 = scmp.eq.s32.totalorder %s21, 1
      %p128 = scmp.ne.s32.totalorder %s123, %s125
      %p129 = scmp.eq.s32.totalorder %s21, 0
      %p130 = por %p128, %p129
      %p131 = scmp.ne.s32.totalorder %s123, %s125
      %p132 = scmp.eq.s32.totalorder %s26, 1
      %p133 = por %p131, %p132
      %p134 = scmp.ne.s32.totalorder %s125, %s126
      %p135 = scmp.eq.s32.totalorder %s26, 0
      %p136 = por %p134, %p135
      %p137 = scmp.ne.s32.totalorder %s125, %s126
      %p138 = scmp.eq.s32.totalorder %s27, 1
      %p139 = por %p137, %p138
      %p141 = scmp.ne.s32.totalorder %s126, %s140
      %p142 = scmp.eq.s32.totalorder %s27, 0
      %p143 = por %p141, %p142
      %s145 = sadd.s32 %s144, 1
      %p148 = scmp.eq.s32.totalorder %s21, 1
      %p149 = scmp.ne.s32.totalorder %s144, %s146
      %p150 = scmp.eq.s32.totalorder %s21, 0
      %p151 = por %p149, %p150
      %p152 = scmp.ne.s32.totalorder %s144, %s146
      %p153 = scmp.eq.s32.totalorder %s26, 1
      %p154 = por %p152, %p153
      %p155 = scmp.ne.s32.totalorder %s146, %s147
      %p156 = scmp.eq.s32.totalorder %s26, 0
      %p157 = por %p155, %p156
      %p158 = scmp.ne.s32.totalorder %s146, %s147
      %p159 = scmp.eq.s32.totalorder %s27, 1
      %p160 = por %p158, %p159
      %p162 = scmp.ne.s32.totalorder %s147, %s161
      %p163 = scmp.eq.s32.totalorder %s27, 0
      %p164 = por %p162, %p163
      %s166 = sadd.s32 %s165, 1
      %p169 = scmp.eq.s32.totalorder %s21, 1
      %p170 = scmp.ne.s32.totalorder %s165, %s167
      %p171 = scmp.eq.s32.totalorder %s21, 0
      %p172 = por %p170, %p171
      %p173 = scmp.ne.s32.totalorder %s165, %s167
      %p174 = scmp.eq.s32.totalorder %s26, 1
      %p175 = por %p173, %p174
      %p176 = scmp.ne.s32.totalorder %s167, %s168
      %p177 = scmp.eq.s32.totalorder %s26, 0
      %p178 = por %p176, %p177
      %p179 = scmp.ne.s32.totalorder %s167, %s168
      %p180 = scmp.eq.s32.totalorder %s27, 1
      %p181 = por %p179, %p180
      %p183 = scmp.ne.s32.totalorder %s168, %s182
      %p184 = scmp.eq.s32.totalorder %s27, 0
      %p185 = por %p183, %p184
      %s187 = sadd.s32 %s186, 1
      %p190 = scmp.eq.s32.totalorder %s21, 1
      %p191 = scmp.ne.s32.totalorder %s186, %s188
      %p192 = scmp.eq.s32.totalorder %s21, 0
      %p193 = por %p191, %p192
      %p194 = scmp.ne.s32.totalorder %s186, %s188
      %p195 = scmp.eq.s32.totalorder %s26, 1
      %p196 = por %p194, %p195
      %p197 = scmp.ne.s32.totalorder %s188, %s189
      %p198 = scmp.eq.s32.totalorder %s26, 0
      %p199 = por %p197, %p198
      %p200 = scmp.ne.s32.totalorder %s188, %s189
      %p201 = scmp.eq.s32.totalorder %s27, 1
      %p202 = por %p200, %p201
      %p204 = scmp.ne.s32.totalorder %s189, %s203
      %p205 = scmp.eq.s32.totalorder %s27, 0
      %p206 = por %p204, %p205
      %s207 = ssub.s32 %s21, %s28
      %p208 = scmp.eq.s32.totalorder %s207, 0
      %s210 = sadd.s32 %s209, 1
      %s211 = scalar_select %p208, %s209, %s210
      %p214 = pneg %p208
      %p215 = scmp.eq.s32.totalorder %s21, 1
      %p216 = por %p214, %p215
      %p217 = scmp.ne.s32.totalorder %s209, %s212
      %p218 = scmp.eq.s32.totalorder %s21, 0
      %p219 = por %p217, %p218
      %p220 = scmp.ne.s32.totalorder %s209, %s212
      %p221 = scmp.eq.s32.totalorder %s26, 1
      %p222 = por %p220, %p221
      %p223 = scmp.ne.s32.totalorder %s212, %s213
      %p224 = scmp.eq.s32.totalorder %s26, 0
      %p225 = por %p223, %p224
      %p226 = scmp.ne.s32.totalorder %s212, %s213
      %p227 = scmp.eq.s32.totalorder %s27, 1
      %p228 = por %p226, %p227
      %p230 = scmp.ne.s32.totalorder %s213, %s229
      %p231 = scmp.eq.s32.totalorder %s27, 0
      %p232 = por %p230, %p231
      %p233 = scmp.le.s32.totalorder 1, %s21
      %p234 = scmp.lt.s32.totalorder %s21, 3
      %p235 = pnand %p233, %p234
      %p236 = pneg %p235
      // Predicated region
      $region9: #{tpu_custom_call.1} parent=5 // pred_check
        _
      $region10: #{tpu_custom_call.1} parent=5 // pred_check_branch
        %238 = sbr.rel (%p235) target = $region12
      $region11: #{tpu_custom_call.1} parent=5 // pred_region
        %s239 = ssub.s32 %s21, 1
        // Predicated region
        $region13: #{tpu_custom_call.1} parent=11 // pred_check
          %p240 = pneg %p94
        $region14: #{tpu_custom_call.1} parent=11 // pred_check_branch
          %242 = sbr.rel (%p240) target = $region16
        $region15: #{tpu_custom_call.1} parent=11 // pred_region
          _
        $region16: #{tpu_custom_call.1} parent=11 // pred_fallthru
          _
        // Predicated region
        $region17: #{tpu_custom_call.1} parent=11 // pred_check
          %p243 = pneg %p115
        $region18: #{tpu_custom_call.1} parent=11 // pred_check_branch
          %245 = sbr.rel (%p243) target = $region20
        $region19: #{tpu_custom_call.1} parent=11 // pred_region
          _
        $region20: #{tpu_custom_call.1} parent=11 // pred_fallthru
          _
        // Predicated region
        $region21: #{tpu_custom_call.1} parent=11 // pred_check
          %p246 = pneg %p136
        $region22: #{tpu_custom_call.1} parent=11 // pred_check_branch
          %248 = sbr.rel (%p246) target = $region24
        $region23: #{tpu_custom_call.1} parent=11 // pred_region
          %s250 = ssub.s32 256, 256
          %251 = vsyncadd [#allocation6], %s250
          %s252 = sshll.u32 [#allocation5], 4
          %s253 = int_to_ptr.vmem [resolvable:$true] %s252
          %258 = dma.hbm_to_vmem [thread:$0]  %s4, 256, %s253, [#allocation6], 64, 64, 4
        $region24: #{tpu_custom_call.1} parent=11 // pred_fallthru
          _
        // Predicated region
        $region25: #{tpu_custom_call.1} parent=11 // pred_check
          %p259 = pneg %p157
        $region26: #{tpu_custom_call.1} parent=11 // pred_check_branch
          %261 = sbr.rel (%p259) target = $region28
        $region27: #{tpu_custom_call.1} parent=11 // pred_region
          _
        $region28: #{tpu_custom_call.1} parent=11 // pred_fallthru
          _
        // Predicated region
        $region29: #{tpu_custom_call.1} parent=11 // pred_check
          %p262 = pneg %p178
        $region30: #{tpu_custom_call.1} parent=11 // pred_check_branch
          %264 = sbr.rel (%p262) target = $region32
        $region31: #{tpu_custom_call.1} parent=11 // pred_region
          _
        $region32: #{tpu_custom_call.1} parent=11 // pred_fallthru
          _
        // Predicated region
        $region33: #{tpu_custom_call.1} parent=11 // pred_check
          %p265 = pneg %p199
        $region34: #{tpu_custom_call.1} parent=11 // pred_check_branch
          %267 = sbr.rel (%p265) target = $region36
        $region35: #{tpu_custom_call.1} parent=11 // pred_region
          _
        $region36: #{tpu_custom_call.1} parent=11 // pred_fallthru
          _
      $region12: #{tpu_custom_call.1} parent=5 // pred_fallthru
        _
      %p268 = scmp.lt.s32.totalorder %s21, 2
      // Predicated region
      $region37: #{tpu_custom_call.1} parent=5 // pred_check
        %p269 = pneg %p268
      $region38: #{tpu_custom_call.1} parent=5 // pred_check_branch
        %271 = sbr.rel (%p269) target = $region40
      $region39: #{tpu_custom_call.1} parent=5 // pred_region
        // Predicated region
        $region41: #{tpu_custom_call.1} parent=39 // pred_check
          %p272 = pneg %p41
        $region42: #{tpu_custom_call.1} parent=39 // pred_check_branch
          %274 = sbr.rel (%p272) target = $region44
        $region43: #{tpu_custom_call.1} parent=39 // pred_region
          %s275 = sand.u32 %s31, 1
          %s276 = scalar_lea.sflag [#allocation3], %s275
          %s277 = sand.u32 %s31, 1
          %s278 = smul.addr %s277, 8
          %s279 = scalar_lea.vmem [#allocation2], %s278
          %s281 = ssub.s32 128, 128
          %282 = vsyncadd %s276, %s281
          %s283 = smul.addr %s21, 128
          %s284 = scalar_lea.hbm %s0, %s283
          %s286 = sshll.u32 %s279, 4
          %s287 = int_to_ptr.vmem [resolvable:$true] %s286
          %289 = dma.hbm_to_vmem [thread:$0]  %s284, 128, %s287, %s276
        $region44: #{tpu_custom_call.1} parent=39 // pred_fallthru
          _
        // Predicated region
        $region45: #{tpu_custom_call.1} parent=39 // pred_check
          %p290 = pneg %p67
        $region46: #{tpu_custom_call.1} parent=39 // pred_check_branch
          %292 = sbr.rel (%p290) target = $region48
        $region47: #{tpu_custom_call.1} parent=39 // pred_region
          %p293 = scmp.lt.s32.totalorder %s21, 1
          %s294 = scalar_select %p293, %s21, 1
          %s295 = scalar_lea.vmem %s1, %s294
        $region48: #{tpu_custom_call.1} parent=39 // pred_fallthru
          _
      $region40: #{tpu_custom_call.1} parent=5 // pred_fallthru
        _
      %p296 = scmp.le.s32.totalorder 1, %s21
      %p297 = scmp.lt.s32.totalorder %s21, 3
      %p298 = pnand %p296, %p297
      %p299 = pneg %p298
      // Predicated region
      $region49: #{tpu_custom_call.1} parent=5 // pred_check
        _
      $region50: #{tpu_custom_call.1} parent=5 // pred_check_branch
        %301 = sbr.rel (%p298) target = $region52
      $region51: #{tpu_custom_call.1} parent=5 // pred_region
        %s302 = ssub.s32 %s21, 1
        %s303 = sand.u32 %s34, 1
        %s304 = scalar_lea.sflag [#allocation3], %s303
        %s305 = sand.u32 %s34, 1
        %s306 = smul.addr %s305, 8
        %s307 = scalar_lea.vmem [#allocation2], %s306
        // Predicated region
        $region53: #{tpu_custom_call.1} parent=51 // pred_check
          %p308 = pneg %p47
        $region54: #{tpu_custom_call.1} parent=51 // pred_check_branch
          %310 = sbr.rel (%p308) target = $region56
        $region55: #{tpu_custom_call.1} parent=51 // pred_region
          %311 = dma.done %s304, 128
        $region56: #{tpu_custom_call.1} parent=51 // pred_fallthru
          _
        // Predicated region
        $region57: #{tpu_custom_call.1} parent=51 // pred_check
          %p312 = pneg %p136
        $region58: #{tpu_custom_call.1} parent=51 // pred_check_branch
          %314 = sbr.rel (%p312) target = $region60
        $region59: #{tpu_custom_call.1} parent=51 // pred_region
          %315 = dma.done [#allocation6], 256
        $region60: #{tpu_custom_call.1} parent=51 // pred_fallthru
          _
        %s316 = sand.u32 %s34, 1
        %s317 = scalar_lea.sflag [#allocation3], %s316
        %s318 = sand.u32 %s34, 1
        %s319 = smul.addr %s318, 8
        %s320 = scalar_lea.vmem [#allocation2], %s319
        %p321 = pneg %p47
        %p322 = pneg %p44
        %p323 = scmp.lt.s32.totalorder %s26, 1
        %s324 = scalar_select %p323, %s26, 1
        %s325 = scalar_lea.vmem %s1, %s324
        %p326 = pneg %p73
        %p327 = pneg %p70
        %p328 = pneg %p94
        %p329 = pneg %p91
        %p330 = pneg %p115
        %p331 = pneg %p112
        %p332 = pneg %p136
        %p333 = pneg %p133
        %p334 = pneg %p157
        %p335 = pneg %p154
        %p336 = pneg %p178
        %p337 = pneg %p175
        %p338 = pneg %p199
        %p339 = pneg %p196
        %p340 = pneg %p225
        %p341 = pneg %p222
        %s342 = sand.u32 %s212, 1
        %s343 = scalar_lea.sflag [#allocation4], %s342
        %s344 = sand.u32 %s212, 1
        %s345 = smul.addr %s344, 8
        %s346 = scalar_lea.vmem [#allocation7], %s345
        %p347 = scmp.lt.s32.totalorder %s26, 1
        %s348 = scalar_select %p347, %s26, 1
        %s349 = scalar_lea.vmem %s1, %s348
        %v351 = vld [vmem:[%s307] sm:$0xff]
        %v352 = vld [vmem:[%s2] sm:$0x1]
        %v353 = vld [vmem:[%s3] sm:$0x1]
        %vm354 = vcmask 261120
        %v355 = vsel %vm354, %v351, 0.0
        %356 = vadd.xlane.f32.xlu0 %v355
        %v357 = vpop.xlane.xlu0 %356
        %v358 = vrcp.pop 32.0
        %v359 = vmul.f32 %v357, %v358
        %v360 = vsub.f32 %v351, %v359
        %v361 = vmul.f32 %v360, %v360
        %v362 = vsel %vm354, %v361, 0.0
        %363 = vadd.xlane.f32.xlu0 %v362
        %v364 = vpop.xlane.xlu0 %363
        %v365 = vmul.f32 %v364, %v358
        %v366 = vadd.f32 %v365, 1e-06
        %v367 = vrsqrt.pop %v366
        %v368 = vmul.f32 %v360, %v367
        %v370 = vlaneseq
        %v371 = vshrl.u32 %v370, 7
        %v372 = vsub.s32 0, %v371
        %v373 = vrot.slane %v352, %v372
        %v375 = vmul.f32 %v368, %v373
        %v377 = vlaneseq
        %v378 = vshrl.u32 %v377, 7
        %v379 = vsub.s32 0, %v378
        %v380 = vrot.slane %v353, %v379
        %v382 = vadd.f32 %v375, %v380
        %v383 = vld [vmem:[#allocation5] sm:$0xf]
        %v384 = vld [vmem:[#allocation5 + $0x4] sm:$0xf]
        %v385 = vld [vmem:[#allocation5 + $0x8] sm:$0xf]
        %v386 = vld [vmem:[#allocation5 + $0xc] sm:$0xf]
        %v387 = vpack.c.bf16 %v382, %v382
        %v388 = vld [vmem:[%s5] sm:$0x1]
        %v390 = vlaneseq
        %v391 = vshrl.u32 %v390, 7
        %v392 = vsub.s32 0, %v391
        %v393 = vrot.slane %v388, %v392
        %v399 = vunpack.c.l.b16 %v383
        %v400 = vunpack.c.l.b16 %v384
        %v401 = vunpack.c.l.b16 %v385
        %v402 = vunpack.c.l.b16 %v386
        %v403 = vpack.c.b16 %v400, %v399
        %v404 = vpack.c.b16 %v402, %v401
        %v408 = vsel %vm354, %v387, 0
        %410 = vmatprep.subr.bf16.mxu0 0
        %411 = vmatpush1.bf16.msra.mxu0 %v403
        %412 = vmatprep.subr.bf16.mxu0 0
        %413 = vmatpush1.bf16.msra.mxu0 %v404
        %414 = vmatprep.subr.bf16.mxu0 0
        %415 = vmatpush1.bf16.msra.mxu0 0
        %416 = vmatprep.subr.bf16.mxu0 0
        %417 = vmatpush1.bf16.msra.mxu0 0
        %418 = vmatprep.subr.bf16.mxu0 0
        %419 = vmatpush1.bf16.msra.mxu0 0
        %420 = vmatprep.subr.bf16.mxu0 0
        %421 = vmatpush1.bf16.msra.mxu0 0
        %422 = vmatprep.subr.bf16.mxu0 0
        %423 = vmatpush1.bf16.msra.mxu0 0
        %424 = vmatprep.subr.bf16.mxu0 0
        %425 = vmatpush1.bf16.msra.mxu0 0
        %426 = vmatprep.subr.bf16.mxu0 0
        %427 = vmatpush1.bf16.msra.mxu0 0
        %428 = vmatprep.subr.bf16.mxu0 0
        %429 = vmatpush1.bf16.msra.mxu0 0
        %430 = vmatprep.subr.bf16.mxu0 0
        %431 = vmatpush1.bf16.msra.mxu0 0
        %432 = vmatprep.subr.bf16.mxu0 0
        %433 = vmatpush1.bf16.msra.mxu0 0
        %434 = vmatprep.subr.bf16.mxu0 0
        %435 = vmatpush1.bf16.msra.mxu0 0
        %436 = vmatprep.subr.bf16.mxu0 0
        %437 = vmatpush1.bf16.msra.mxu0 0
        %438 = vmatprep.subr.bf16.mxu0 0
        %439 = vmatpush1.bf16.msra.mxu0 0
        %440 = vmatprep.subr.bf16.mxu0 0
        %441 = vmatpush1.bf16.msra.mxu0 0
        %442 = vmatprep.mubr.bf16.mxu0 0
        %443 = vmatmul.mubr.bf16.gmra.mrb[0].mxu0 %v408
        %v444 = vpop.f32.mrb[0].mxu0
        %v445 = vadd.f32 %v393, %v444
        %v446 = vpop.f32.mrb[0].mxu0
        %v447 = vpop.f32.mrb[0].mxu0
        %v448 = vpop.f32.mrb[0].mxu0
        %449 = vdwg.mxu0
        %451 = vrot.lane.b32.xlu0 %v445, 120
        %v452 = vpop.permute.xlu0 %451
        %454 = vrot.lane.b32.xlu0 %v445, 112
        %v455 = vpop.permute.xlu0 %454
        %457 = vrot.lane.b32.xlu0 %v445, 104
        %v458 = vpop.permute.xlu0 %457
        %v460 = vld [vmem:[%s349] sm:$0x1]
        %v461 = vmul.f32 %v445, 0.35355338
        %v462 = vmul.f32 %v452, 0.35355338
        %v463 = vmul.f32 %v455, 0.35355338
        %v464 = vmul.f32 %v458, 0.35355338
        %v465 = vpack.c.bf16 %v461, %v461
        %v466 = vpack.c.bf16 %v462, %v462
        %v467 = vpack.c.bf16 %v463, %v463
        %v468 = vpack.c.bf16 %v464, %v464
        %v469 = vpack.c.bf16 %v445, %v445
        %v470 = vpack.c.bf16 %v452, %v452
        %v471 = vpack.c.bf16 %v455, %v455
        %v472 = vpack.c.bf16 %v458, %v458
        %v474 = vlaneseq
        %v475 = vshrl.u32 %v474, 7
        %v476 = vsub.s32 0, %v475
        %v477 = vrot.slane %v460, %v476
        %480 = vrot.lane.b32.xlu0 %v469, 96
        %v481 = vpop.permute.xlu0 %480
        %vm482 = vcmask 64512
        %v484 = vsel %vm482, %v465, 0
        %v487 = vsel %vm482, %v481, 0
        %489 = vmatprep.subr.bf16.mxu0 0
        %490 = vmatpush1.bf16.xpose.msra.mxu0 %v487
        %491 = vmatprep.subr.bf16.mxu0 0
        %492 = vmatpush1.bf16.xpose.msra.mxu0 0
        %493 = vmatprep.subr.bf16.mxu0 0
        %494 = vmatpush1.bf16.xpose.msra.mxu0 0
        %495 = vmatprep.subr.bf16.mxu0 0
        %496 = vmatpush1.bf16.xpose.msra.mxu0 0
        %497 = vmatprep.subr.bf16.mxu0 0
        %498 = vmatpush1.bf16.xpose.msra.mxu0 0
        %499 = vmatprep.subr.bf16.mxu0 0
        %500 = vmatpush1.bf16.xpose.msra.mxu0 0
        %501 = vmatprep.subr.bf16.mxu0 0
        %502 = vmatpush1.bf16.xpose.msra.mxu0 0
        %503 = vmatprep.subr.bf16.mxu0 0
        %504 = vmatpush1.bf16.xpose.msra.mxu0 0
        %505 = vmatprep.subr.bf16.mxu0 0
        %506 = vmatpush1.bf16.xpose.msra.mxu0 0
        %507 = vmatprep.subr.bf16.mxu0 0
        %508 = vmatpush1.bf16.xpose.msra.mxu0 0
        %509 = vmatprep.subr.bf16.mxu0 0
        %510 = vmatpush1.bf16.xpose.msra.mxu0 0
        %511 = vmatprep.subr.bf16.mxu0 0
        %512 = vmatpush1.bf16.xpose.msra.mxu0 0
        %513 = vmatprep.subr.bf16.mxu0 0
        %514 = vmatpush1.bf16.xpose.msra.mxu0 0
        %515 = vmatprep.subr.bf16.mxu0 0
        %516 = vmatpush1.bf16.xpose.msra.mxu0 0
        %517 = vmatprep.subr.bf16.mxu0 0
        %518 = vmatpush1.bf16.xpose.msra.mxu0 0
        %519 = vmatprep.subr.bf16.mxu0 0
        %520 = vmatpush1.bf16.xpose.msra.mxu0 0
        %521 = vmatprep.mubr.bf16.mxu0 0
        %522 = vmatmul.mubr.bf16.gmra.mrb[0].mxu0 %v484
        %v523 = vpop.f32.mrb[0].mxu0
        %v524 = vadd.f32 %v477, %v523
        %v525 = vpop.f32.mrb[0].mxu0
        %v526 = vpop.f32.mrb[0].mxu0
        %v527 = vpop.f32.mrb[0].mxu0
        %528 = vdwg.mxu0
        %530 = vrot.lane.b32.xlu0 %v470, 96
        %v531 = vpop.permute.xlu0 %530
        %v533 = vsel %vm482, %v466, 0
        %v536 = vsel %vm482, %v531, 0
        %538 = vmatprep.subr.bf16.mxu0 0
        %539 = vmatpush1.bf16.xpose.msra.mxu0 %v536
        %540 = vmatprep.subr.bf16.mxu0 0
        %541 = vmatpush1.bf16.xpose.msra.mxu0 0
        %542 = vmatprep.subr.bf16.mxu0 0
        %543 = vmatpush1.bf16.xpose.msra.mxu0 0
        %544 = vmatprep.subr.bf16.mxu0 0
        %545 = vmatpush1.bf16.xpose.msra.mxu0 0
        %546 = vmatprep.subr.bf16.mxu0 0
        %547 = vmatpush1.bf16.xpose.msra.mxu0 0
        %548 = vmatprep.subr.bf16.mxu0 0
        %549 = vmatpush1.bf16.xpose.msra.mxu0 0
        %550 = vmatprep.subr.bf16.mxu0 0
        %551 = vmatpush1.bf16.xpose.msra.mxu0 0
        %552 = vmatprep.subr.bf16.mxu0 0
        %553 = vmatpush1.bf16.xpose.msra.mxu0 0
        %554 = vmatprep.subr.bf16.mxu0 0
        %555 = vmatpush1.bf16.xpose.msra.mxu0 0
        %556 = vmatprep.subr.bf16.mxu0 0
        %557 = vmatpush1.bf16.xpose.msra.mxu0 0
        %558 = vmatprep.subr.bf16.mxu0 0
        %559 = vmatpush1.bf16.xpose.msra.mxu0 0
        %560 = vmatprep.subr.bf16.mxu0 0
        %561 = vmatpush1.bf16.xpose.msra.mxu0 0
        %562 = vmatprep.subr.bf16.mxu0 0
        %563 = vmatpush1.bf16.xpose.msra.mxu0 0
        %564 = vmatprep.subr.bf16.mxu0 0
        %565 = vmatpush1.bf16.xpose.msra.mxu0 0
        %566 = vmatprep.subr.bf16.mxu0 0
        %567 = vmatpush1.bf16.xpose.msra.mxu0 0
        %568 = vmatprep.subr.bf16.mxu0 0
        %569 = vmatpush1.bf16.xpose.msra.mxu0 0
        %570 = vmatprep.mubr.bf16.mxu0 0
        %571 = vmatmul.mubr.bf16.gmra.mrb[0].mxu0 %v533
        %v572 = vpop.f32.mrb[0].mxu0
        %v573 = vadd.f32 %v477, %v572
        %v574 = vpop.f32.mrb[0].mxu0
        %v575 = vpop.f32.mrb[0].mxu0
        %v576 = vpop.f32.mrb[0].mxu0
        %577 = vdwg.mxu0
        %579 = vrot.lane.b32.xlu0 %v471, 96
        %v580 = vpop.permute.xlu0 %579
        %v582 = vsel %vm482, %v467, 0
        %v585 = vsel %vm482, %v580, 0
        %587 = vmatprep.subr.bf16.mxu0 0
        %588 = vmatpush1.bf16.xpose.msra.mxu0 %v585
        %589 = vmatprep.subr.bf16.mxu0 0
        %590 = vmatpush1.bf16.xpose.msra.mxu0 0
        %591 = vmatprep.subr.bf16.mxu0 0
        %592 = vmatpush1.bf16.xpose.msra.mxu0 0
        %593 = vmatprep.subr.bf16.mxu0 0
        %594 = vmatpush1.bf16.xpose.msra.mxu0 0
        %595 = vmatprep.subr.bf16.mxu0 0
        %596 = vmatpush1.bf16.xpose.msra.mxu0 0
        %597 = vmatprep.subr.bf16.mxu0 0
        %598 = vmatpush1.bf16.xpose.msra.mxu0 0
        %599 = vmatprep.subr.bf16.mxu0 0
        %600 = vmatpush1.bf16.xpose.msra.mxu0 0
        %601 = vmatprep.subr.bf16.mxu0 0
        %602 = vmatpush1.bf16.xpose.msra.mxu0 0
        %603 = vmatprep.subr.bf16.mxu0 0
        %604 = vmatpush1.bf16.xpose.msra.mxu0 0
        %605 = vmatprep.subr.bf16.mxu0 0
        %606 = vmatpush1.bf16.xpose.msra.mxu0 0
        %607 = vmatprep.subr.bf16.mxu0 0
        %608 = vmatpush1.bf16.xpose.msra.mxu0 0
        %609 = vmatprep.subr.bf16.mxu0 0
        %610 = vmatpush1.bf16.xpose.msra.mxu0 0
        %611 = vmatprep.subr.bf16.mxu0 0
        %612 = vmatpush1.bf16.xpose.msra.mxu0 0
        %613 = vmatprep.subr.bf16.mxu0 0
        %614 = vmatpush1.bf16.xpose.msra.mxu0 0
        %615 = vmatprep.subr.bf16.mxu0 0
        %616 = vmatpush1.bf16.xpose.msra.mxu0 0
        %617 = vmatprep.subr.bf16.mxu0 0
        %618 = vmatpush1.bf16.xpose.msra.mxu0 0
        %619 = vmatprep.mubr.bf16.mxu0 0
        %620 = vmatmul.mubr.bf16.gmra.mrb[0].mxu0 %v582
        %v621 = vpop.f32.mrb[0].mxu0
        %v622 = vadd.f32 %v477, %v621
        %v623 = vpop.f32.mrb[0].mxu0
        %v624 = vpop.f32.mrb[0].mxu0
        %v625 = vpop.f32.mrb[0].mxu0
        %626 = vdwg.mxu0
        %628 = vrot.lane.b32.xlu0 %v472, 96
        %v629 = vpop.permute.xlu0 %628
        %v631 = vsel %vm482, %v468, 0
        %v634 = vsel %vm482, %v629, 0
        %636 = vmatprep.subr.bf16.mxu0 0
        %637 = vmatpush1.bf16.xpose.msra.mxu0 %v634
        %638 = vmatprep.subr.bf16.mxu0 0
        %639 = vmatpush1.bf16.xpose.msra.mxu0 0
        %640 = vmatprep.subr.bf16.mxu0 0
        %641 = vmatpush1.bf16.xpose.msra.mxu0 0
        %642 = vmatprep.subr.bf16.mxu0 0
        %643 = vmatpush1.bf16.xpose.msra.mxu0 0
        %644 = vmatprep.subr.bf16.mxu0 0
        %645 = vmatpush1.bf16.xpose.msra.mxu0 0
        %646 = vmatprep.subr.bf16.mxu0 0
        %647 = vmatpush1.bf16.xpose.msra.mxu0 0
        %648 = vmatprep.subr.bf16.mxu0 0
        %649 = vmatpush1.bf16.xpose.msra.mxu0 0
        %650 = vmatprep.subr.bf16.mxu0 0
        %651 = vmatpush1.bf16.xpose.msra.mxu0 0
        %652 = vmatprep.subr.bf16.mxu0 0
        %653 = vmatpush1.bf16.xpose.msra.mxu0 0
        %654 = vmatprep.subr.bf16.mxu0 0
        %655 = vmatpush1.bf16.xpose.msra.mxu0 0
        %656 = vmatprep.subr.bf16.mxu0 0
        %657 = vmatpush1.bf16.xpose.msra.mxu0 0
        %658 = vmatprep.subr.bf16.mxu0 0
        %659 = vmatpush1.bf16.xpose.msra.mxu0 0
        %660 = vmatprep.subr.bf16.mxu0 0
        %661 = vmatpush1.bf16.xpose.msra.mxu0 0
        %662 = vmatprep.subr.bf16.mxu0 0
        %663 = vmatpush1.bf16.xpose.msra.mxu0 0
        %664 = vmatprep.subr.bf16.mxu0 0
        %665 = vmatpush1.bf16.xpose.msra.mxu0 0
        %666 = vmatprep.subr.bf16.mxu0 0
        %667 = vmatpush1.bf16.xpose.msra.mxu0 0
        %668 = vmatprep.mubr.bf16.mxu0 0
        %669 = vmatmul.mubr.bf16.gmra.mrb[0].mxu0 %v631
        %v670 = vpop.f32.mrb[0].mxu0
        %v671 = vadd.f32 %v477, %v670
        %v672 = vpop.f32.mrb[0].mxu0
        %v673 = vpop.f32.mrb[0].mxu0
        %v674 = vpop.f32.mrb[0].mxu0
        %675 = vdwg.mxu0
        %v676 = vsel %vm482, %v524, -inf
        %677 = vmax.xlane.f32.xlu0 %v676
        %v678 = vpop.xlane.xlu0 %677
        %v679 = vsel %vm482, %v573, -inf
        %680 = vmax.xlane.f32.xlu0 %v679
        %v681 = vpop.xlane.xlu0 %680
        %v682 = vsel %vm482, %v622, -inf
        %683 = vmax.xlane.f32.xlu0 %v682
        %v684 = vpop.xlane.xlu0 %683
        %v685 = vsel %vm482, %v671, -inf
        %686 = vmax.xlane.f32.xlu0 %v685
        %v687 = vpop.xlane.xlu0 %686
        %v688 = vsub.f32 %v524, %v678
        %v689 = vsub.f32 %v573, %v681
        %v690 = vsub.f32 %v622, %v684
        %v691 = vsub.f32 %v671, %v687
        %v692 = vmul.f32 %v688, 1.442695
        %v693 = vpow.pop %v692
        %v694 = vmul.f32 %v689, 1.442695
        %v695 = vpow.pop %v694
        %v696 = vmul.f32 %v690, 1.442695
        %v697 = vpow.pop %v696
        %v698 = vmul.f32 %v691, 1.442695
        %v699 = vpow.pop %v698
        %v700 = vsel %vm482, %v693, 0.0
        %701 = vadd.xlane.f32.xlu0 %v700
        %v702 = vpop.xlane.xlu0 %701
        %v703 = vsel %vm482, %v695, 0.0
        %704 = vadd.xlane.f32.xlu0 %v703
        %v705 = vpop.xlane.xlu0 %704
        %v706 = vsel %vm482, %v697, 0.0
        %707 = vadd.xlane.f32.xlu0 %v706
        %v708 = vpop.xlane.xlu0 %707
        %v709 = vsel %vm482, %v699, 0.0
        %710 = vadd.xlane.f32.xlu0 %v709
        %v711 = vpop.xlane.xlu0 %710
        %v712 = vrcp.pop %v702
        %v713 = vmul.f32 %v693, %v712
        %v714 = vrcp.pop %v705
        %v715 = vmul.f32 %v695, %v714
        %v716 = vrcp.pop %v708
        %v717 = vmul.f32 %v697, %v716
        %v718 = vrcp.pop %v711
        %v719 = vmul.f32 %v699, %v718
        %v720 = vpack.c.bf16 %v713, %v713
        %v721 = vpack.c.bf16 %v715, %v715
        %v722 = vpack.c.bf16 %v717, %v717
        %v723 = vpack.c.bf16 %v719, %v719
        %724 = vrot.lane.b32.xlu0 %v469, 64
        %v725 = vpop.permute.xlu0 %724
        %v727 = vsel %vm482, %v720, 0
        %vm729 = vcmask 1043456
        %v731 = vsel %vm729, %v725, 0
        %733 = vmatprep.subr.bf16.mxu0 0
        %734 = vmatpush1.bf16.msra.mxu0 %v731
        %735 = vmatprep.subr.bf16.mxu0 0
        %736 = vmatpush1.bf16.msra.mxu0 0
        %737 = vmatprep.subr.bf16.mxu0 0
        %738 = vmatpush1.bf16.msra.mxu0 0
        %739 = vmatprep.subr.bf16.mxu0 0
        %740 = vmatpush1.bf16.msra.mxu0 0
        %741 = vmatprep.subr.bf16.mxu0 0
        %742 = vmatpush1.bf16.msra.mxu0 0
        %743 = vmatprep.subr.bf16.mxu0 0
        %744 = vmatpush1.bf16.msra.mxu0 0
        %745 = vmatprep.subr.bf16.mxu0 0
        %746 = vmatpush1.bf16.msra.mxu0 0
        %747 = vmatprep.subr.bf16.mxu0 0
        %748 = vmatpush1.bf16.msra.mxu0 0
        %749 = vmatprep.subr.bf16.mxu0 0
        %750 = vmatpush1.bf16.msra.mxu0 0
        %751 = vmatprep.subr.bf16.mxu0 0
        %752 = vmatpush1.bf16.msra.mxu0 0
        %753 = vmatprep.subr.bf16.mxu0 0
        %754 = vmatpush1.bf16.msra.mxu0 0
        %755 = vmatprep.subr.bf16.mxu0 0
        %756 = vmatpush1.bf16.msra.mxu0 0
        %757 = vmatprep.subr.bf16.mxu0 0
        %758 = vmatpush1.bf16.msra.mxu0 0
        %759 = vmatprep.subr.bf16.mxu0 0
        %760 = vmatpush1.bf16.msra.mxu0 0
        %761 = vmatprep.subr.bf16.mxu0 0
        %762 = vmatpush1.bf16.msra.mxu0 0
        %763 = vmatprep.subr.bf16.mxu0 0
        %764 = vmatpush1.bf16.msra.mxu0 0
        %765 = vmatprep.mubr.bf16.mxu0 0
        %766 = vmatmul.mubr.bf16.gmra.mrb[0].mxu0 %v727
        %v767 = vpop.f32.mrb[0].mxu0
        %v768 = vadd.f32 0.0, %v767
        %v769 = vpop.f32.mrb[0].mxu0
        %v770 = vpop.f32.mrb[0].mxu0
        %v771 = vpop.f32.mrb[0].mxu0
        %772 = vdwg.mxu0
        %773 = vrot.lane.b32.xlu0 %v470, 64
        %v774 = vpop.permute.xlu0 %773
        %v776 = vsel %vm482, %v721, 0
        %v779 = vsel %vm729, %v774, 0
        %781 = vmatprep.subr.bf16.mxu0 0
        %782 = vmatpush1.bf16.msra.mxu0 %v779
        %783 = vmatprep.subr.bf16.mxu0 0
        %784 = vmatpush1.bf16.msra.mxu0 0
        %785 = vmatprep.subr.bf16.mxu0 0
        %786 = vmatpush1.bf16.msra.mxu0 0
        %787 = vmatprep.subr.bf16.mxu0 0
        %788 = vmatpush1.bf16.msra.mxu0 0
        %789 = vmatprep.subr.bf16.mxu0 0
        %790 = vmatpush1.bf16.msra.mxu0 0
        %791 = vmatprep.subr.bf16.mxu0 0
        %792 = vmatpush1.bf16.msra.mxu0 0
        %793 = vmatprep.subr.bf16.mxu0 0
        %794 = vmatpush1.bf16.msra.mxu0 0
        %795 = vmatprep.subr.bf16.mxu0 0
        %796 = vmatpush1.bf16.msra.mxu0 0
        %797 = vmatprep.subr.bf16.mxu0 0
        %798 = vmatpush1.bf16.msra.mxu0 0
        %799 = vmatprep.subr.bf16.mxu0 0
        %800 = vmatpush1.bf16.msra.mxu0 0
        %801 = vmatprep.subr.bf16.mxu0 0
        %802 = vmatpush1.bf16.msra.mxu0 0
        %803 = vmatprep.subr.bf16.mxu0 0
        %804 = vmatpush1.bf16.msra.mxu0 0
        %805 = vmatprep.subr.bf16.mxu0 0
        %806 = vmatpush1.bf16.msra.mxu0 0
        %807 = vmatprep.subr.bf16.mxu0 0
        %808 = vmatpush1.bf16.msra.mxu0 0
        %809 = vmatprep.subr.bf16.mxu0 0
        %810 = vmatpush1.bf16.msra.mxu0 0
        %811 = vmatprep.subr.bf16.mxu0 0
        %812 = vmatpush1.bf16.msra.mxu0 0
        %813 = vmatprep.mubr.bf16.mxu0 0
        %814 = vmatmul.mubr.bf16.gmra.mrb[0].mxu0 %v776
        %v815 = vpop.f32.mrb[0].mxu0
        %v816 = vadd.f32 0.0, %v815
        %v817 = vpop.f32.mrb[0].mxu0
        %v818 = vpop.f32.mrb[0].mxu0
        %v819 = vpop.f32.mrb[0].mxu0
        %820 = vdwg.mxu0
        %821 = vrot.lane.b32.xlu0 %v471, 64
        %v822 = vpop.permute.xlu0 %821
        %v824 = vsel %vm482, %v722, 0
        %v827 = vsel %vm729, %v822, 0
        %829 = vmatprep.subr.bf16.mxu0 0
        %830 = vmatpush1.bf16.msra.mxu0 %v827
        %831 = vmatprep.subr.bf16.mxu0 0
        %832 = vmatpush1.bf16.msra.mxu0 0
        %833 = vmatprep.subr.bf16.mxu0 0
        %834 = vmatpush1.bf16.msra.mxu0 0
        %835 = vmatprep.subr.bf16.mxu0 0
        %836 = vmatpush1.bf16.msra.mxu0 0
        %837 = vmatprep.subr.bf16.mxu0 0
        %838 = vmatpush1.bf16.msra.mxu0 0
        %839 = vmatprep.subr.bf16.mxu0 0
        %840 = vmatpush1.bf16.msra.mxu0 0
        %841 = vmatprep.subr.bf16.mxu0 0
        %842 = vmatpush1.bf16.msra.mxu0 0
        %843 = vmatprep.subr.bf16.mxu0 0
        %844 = vmatpush1.bf16.msra.mxu0 0
        %845 = vmatprep.subr.bf16.mxu0 0
        %846 = vmatpush1.bf16.msra.mxu0 0
        %847 = vmatprep.subr.bf16.mxu0 0
        %848 = vmatpush1.bf16.msra.mxu0 0
        %849 = vmatprep.subr.bf16.mxu0 0
        %850 = vmatpush1.bf16.msra.mxu0 0
        %851 = vmatprep.subr.bf16.mxu0 0
        %852 = vmatpush1.bf16.msra.mxu0 0
        %853 = vmatprep.subr.bf16.mxu0 0
        %854 = vmatpush1.bf16.msra.mxu0 0
        %855 = vmatprep.subr.bf16.mxu0 0
        %856 = vmatpush1.bf16.msra.mxu0 0
        %857 = vmatprep.subr.bf16.mxu0 0
        %858 = vmatpush1.bf16.msra.mxu0 0
        %859 = vmatprep.subr.bf16.mxu0 0
        %860 = vmatpush1.bf16.msra.mxu0 0
        %861 = vmatprep.mubr.bf16.mxu0 0
        %862 = vmatmul.mubr.bf16.gmra.mrb[0].mxu0 %v824
        %v863 = vpop.f32.mrb[0].mxu0
        %v864 = vadd.f32 0.0, %v863
        %v865 = vpop.f32.mrb[0].mxu0
        %v866 = vpop.f32.mrb[0].mxu0
        %v867 = vpop.f32.mrb[0].mxu0
        %868 = vdwg.mxu0
        %869 = vrot.lane.b32.xlu0 %v472, 64
        %v870 = vpop.permute.xlu0 %869
        %v872 = vsel %vm482, %v723, 0
        %v875 = vsel %vm729, %v870, 0
        %877 = vmatprep.subr.bf16.mxu0 0
        %878 = vmatpush1.bf16.msra.mxu0 %v875
        %879 = vmatprep.subr.bf16.mxu0 0
        %880 = vmatpush1.bf16.msra.mxu0 0
        %881 = vmatprep.subr.bf16.mxu0 0
        %882 = vmatpush1.bf16.msra.mxu0 0
        %883 = vmatprep.subr.bf16.mxu0 0
        %884 = vmatpush1.bf16.msra.mxu0 0
        %885 = vmatprep.subr.bf16.mxu0 0
        %886 = vmatpush1.bf16.msra.mxu0 0
        %887 = vmatprep.subr.bf16.mxu0 0
        %888 = vmatpush1.bf16.msra.mxu0 0
        %889 = vmatprep.subr.bf16.mxu0 0
        %890 = vmatpush1.bf16.msra.mxu0 0
        %891 = vmatprep.subr.bf16.mxu0 0
        %892 = vmatpush1.bf16.msra.mxu0 0
        %893 = vmatprep.subr.bf16.mxu0 0
        %894 = vmatpush1.bf16.msra.mxu0 0
        %895 = vmatprep.subr.bf16.mxu0 0
        %896 = vmatpush1.bf16.msra.mxu0 0
        %897 = vmatprep.subr.bf16.mxu0 0
        %898 = vmatpush1.bf16.msra.mxu0 0
        %899 = vmatprep.subr.bf16.mxu0 0
        %900 = vmatpush1.bf16.msra.mxu0 0
        %901 = vmatprep.subr.bf16.mxu0 0
        %902 = vmatpush1.bf16.msra.mxu0 0
        %903 = vmatprep.subr.bf16.mxu0 0
        %904 = vmatpush1.bf16.msra.mxu0 0
        %905 = vmatprep.subr.bf16.mxu0 0
        %906 = vmatpush1.bf16.msra.mxu0 0
        %907 = vmatprep.subr.bf16.mxu0 0
        %908 = vmatpush1.bf16.msra.mxu0 0
        %909 = vmatprep.mubr.bf16.mxu0 0
        %910 = vmatmul.mubr.bf16.gmra.mrb[0].mxu0 %v872
        %v911 = vpop.f32.mrb[0].mxu0
        %v912 = vadd.f32 0.0, %v911
        %v913 = vpop.f32.mrb[0].mxu0
        %v914 = vpop.f32.mrb[0].mxu0
        %v915 = vpop.f32.mrb[0].mxu0
        %916 = vdwg.mxu0
        %918 = vrot.lane.b32.xlu0 %v816, 8
        %v919 = vpop.permute.xlu0 %918
        %922 = vrot.lane.b32.xlu0 %v864, 16
        %v923 = vpop.permute.xlu0 %922
        %926 = vrot.lane.b32.xlu0 %v912, 24
        %v927 = vpop.permute.xlu0 %926
        %v929 = vsel %vm482, %v768, %v919
        %vm930 = vcmask 130048
        %v931 = vsel %vm930, %v929, %v923
        %vm932 = vcmask 195584
        %v933 = vsel %vm932, %v931, %v927
        %v934 = vld [vmem:[%s6] sm:$0xf]
        %v935 = vld [vmem:[%s6 + $0x4] sm:$0xf]
        %v936 = vld [vmem:[%s6 + $0x8] sm:$0xf]
        %v937 = vld [vmem:[%s6 + $0xc] sm:$0xf]
        %v938 = vpack.c.bf16 %v933, %v933
        %v943 = vunpack.c.l.b16 %v934
        %v944 = vunpack.c.l.b16 %v935
        %v945 = vunpack.c.l.b16 %v936
        %v946 = vunpack.c.l.b16 %v937
        %v947 = vpack.c.b16 %v944, %v943
        %v948 = vpack.c.b16 %v946, %v945
        %v952 = vsel %vm354, %v938, 0
        %954 = vmatprep.subr.bf16.mxu0 0
        %955 = vmatpush1.bf16.msra.mxu0 %v947
        %956 = vmatprep.subr.bf16.mxu0 0
        %957 = vmatpush1.bf16.msra.mxu0 %v948
        %958 = vmatprep.subr.bf16.mxu0 0
        %959 = vmatpush1.bf16.msra.mxu0 0
        %960 = vmatprep.subr.bf16.mxu0 0
        %961 = vmatpush1.bf16.msra.mxu0 0
        %962 = vmatprep.subr.bf16.mxu0 0
        %963 = vmatpush1.bf16.msra.mxu0 0
        %964 = vmatprep.subr.bf16.mxu0 0
        %965 = vmatpush1.bf16.msra.mxu0 0
        %966 = vmatprep.subr.bf16.mxu0 0
        %967 = vmatpush1.bf16.msra.mxu0 0
        %968 = vmatprep.subr.bf16.mxu0 0
        %969 = vmatpush1.bf16.msra.mxu0 0
        %970 = vmatprep.subr.bf16.mxu0 0
        %971 = vmatpush1.bf16.msra.mxu0 0
        %972 = vmatprep.subr.bf16.mxu0 0
        %973 = vmatpush1.bf16.msra.mxu0 0
        %974 = vmatprep.subr.bf16.mxu0 0
        %975 = vmatpush1.bf16.msra.mxu0 0
        %976 = vmatprep.subr.bf16.mxu0 0
        %977 = vmatpush1.bf16.msra.mxu0 0
        %978 = vmatprep.subr.bf16.mxu0 0
        %979 = vmatpush1.bf16.msra.mxu0 0
        %980 = vmatprep.subr.bf16.mxu0 0
        %981 = vmatpush1.bf16.msra.mxu0 0
        %982 = vmatprep.subr.bf16.mxu0 0
        %983 = vmatpush1.bf16.msra.mxu0 0
        %984 = vmatprep.subr.bf16.mxu0 0
        %985 = vmatpush1.bf16.msra.mxu0 0
        %986 = vmatprep.mubr.bf16.mxu0 0
        %987 = vmatmul.mubr.bf16.gmra.mrb[0].mxu0 %v952
        %v988 = vpop.f32.mrb[0].mxu0
        %v989 = vadd.f32 0.0, %v988
        %v990 = vpop.f32.mrb[0].mxu0
        %v991 = vpop.f32.mrb[0].mxu0
        %v992 = vpop.f32.mrb[0].mxu0
        %993 = vdwg.mxu0
        %v994 = vadd.f32 %v351, %v989
        %v995 = vld [vmem:[%s7] sm:$0x1]
        %v997 = vlaneseq
        %v998 = vshrl.u32 %v997, 7
        %v999 = vsub.s32 0, %v998
        %v1000 = vrot.slane %v995, %v999
        %v1002 = vadd.f32 %v994, %v1000
        %1003 = vst.msk [vmem:[%s346] sm:$0xff] %vm354, %v1002
        %s1004 = sand.u32 %s212, 1
        %s1005 = scalar_lea.sflag [#allocation4], %s1004
        %s1006 = sand.u32 %s212, 1
        %s1007 = smul.addr %s1006, 8
        %s1008 = scalar_lea.vmem [#allocation7], %s1007
        // Predicated region
        $region61: #{tpu_custom_call.1} parent=51 // pred_check
          %p1009 = pneg %p222
        $region62: #{tpu_custom_call.1} parent=51 // pred_check_branch
          %1011 = sbr.rel (%p1009) target = $region64
        $region63: #{tpu_custom_call.1} parent=51 // pred_region
          %s1013 = ssub.s32 128, 128
          %1014 = vsyncadd %s1005, %s1013
          %s1015 = smul.addr %s26, 128
          %s1016 = scalar_lea.hbm %s8, %s1015
          %s1018 = sshll.u32 %s1008, 4
          %s1019 = int_to_ptr.vmem [resolvable:$true] %s1018
          %1021 = dma.vmem_to_hbm [thread:$0]  %s1019, 128, %s1016, %s1005
        $region64: #{tpu_custom_call.1} parent=51 // pred_fallthru
          _
      $region52: #{tpu_custom_call.1} parent=5 // pred_fallthru
        _
      %p1022 = scmp.le.s32.totalorder 2, %s21
      // Predicated region
      $region65: #{tpu_custom_call.1} parent=5 // pred_check
        %p1023 = pneg %p1022
      $region66: #{tpu_custom_call.1} parent=5 // pred_check_branch
        %1025 = sbr.rel (%p1023) target = $region68
      $region67: #{tpu_custom_call.1} parent=5 // pred_region
        %s1026 = ssub.s32 %s21, 2
        // Predicated region
        $region69: #{tpu_custom_call.1} parent=67 // pred_check
          %p1027 = pneg %p228
        $region70: #{tpu_custom_call.1} parent=67 // pred_check_branch
          %1029 = sbr.rel (%p1027) target = $region72
        $region71: #{tpu_custom_call.1} parent=67 // pred_region
          %s1030 = sand.u32 %s213, 1
          %s1031 = scalar_lea.sflag [#allocation4], %s1030
          %s1032 = sand.u32 %s213, 1
          %s1033 = smul.addr %s1032, 8
          %s1034 = scalar_lea.vmem [#allocation7], %s1033
          %1035 = dma.done %s1031, 128
        $region72: #{tpu_custom_call.1} parent=67 // pred_fallthru
          _
      $region68: #{tpu_custom_call.1} parent=5 // pred_fallthru
        _
    $region6: #{tpu_custom_call.1} parent=1 // loop_footer
      %s25 = sadd.s32 1, %s21
    $region7: #{tpu_custom_call.1} parent=1 // loop_footer_branch
      %20 = sbr.rel target = $region3
    $region8: #{tpu_custom_call.1} parent=1 // loop_exit
      _
    %1036 = vsyncpa [#allocation3], 1
    %s1037 = scalar_lea.sflag [#allocation3], 1
    %1038 = vsyncpa %s1037, 1
    %1039 = vsyncpa [#allocation6], 1
    %1040 = vsyncpa [#allocation4], 1
    %s1041 = scalar_lea.sflag [#allocation4], 1
    %1042 = vsyncpa %s1041, 1

</llo_original>
